<compile_context>
chip_gen: v7x
topology: tpu7x:2x2x1
jax: 0.10.0
libtpu: 0.0.40
codegen_flags: <defaults>
</compile_context>

<pallas_src>
import functools
import math

import numpy as np

import jax
import jax.numpy as jnp
from jax import lax
from jax.experimental import pallas as pl
from jax.experimental.pallas import tpu as pltpu

K_SIZE = 4
STRIDE = 2
PAD = 1
BN_EPS = 1e-5
LANE = 128


def _fold_lane_blocks(row, wo, cs):
    """(1, wo*cs) -> (1, cs): sum the wo lane blocks (VPU/XLU only, no MXU)."""
    if wo == 1:
        return row
    acc = row[:, :cs]
    for w in range(1, wo):
        acc = acc + row[:, w * cs:(w + 1) * cs]
    return acc


def _tile_lane_blocks(row, wo):
    """(1, cs) -> (1, wo*cs): replicate along lanes (no MXU)."""
    if wo == 1:
        return row
    return jnp.concatenate([row] * wo, axis=1)


def _encoder_kernel(*refs, meta):
    """Fused 4x [conv4x4(s2,p1) -> BatchNorm2d(train) -> ReLU (except last)].

    refs = (A0, [R, mask0, mask3, gamma, shift] * n_layers, out, scratch...).
    Activations live as (N*H, W*C) f32 matrices in VMEM for the whole kernel.
    """
    n_layers = len(meta)
    a_ref = refs[0]
    out_ref = refs[1 + 5 * n_layers]
    act_scratch = refs[2 + 5 * n_layers:]

    for li, (m_rows, lin, wo, cs, inv, relu) in enumerate(meta):
        r_ref, m0_ref, m3_ref, g_ref, sh_ref = refs[1 + 5 * li:6 + 5 * li]

        # --- vertical stride-2 taps via strided sublane reads (no 0/1 GEMMs).
        zrow = jnp.zeros((1, lin), jnp.float32)
        s1 = a_ref[pl.ds(0, m_rows, stride=2), :]                    # kh = 1
        s2 = a_ref[pl.ds(1, m_rows, stride=2), :]                    # kh = 2
        if m_rows > 1:
            s0 = jnp.concatenate(                                    # kh = 0
                [zrow, a_ref[pl.ds(1, m_rows - 1, stride=2), :]], axis=0)
            s3 = jnp.concatenate(                                    # kh = 3
                [a_ref[pl.ds(2, m_rows - 1, stride=2), :], zrow], axis=0)
        else:
            s0 = zrow
            s3 = zrow
        s0 = s0 * m0_ref[...]        # zero per-image top-boundary rows
        s3 = s3 * m3_ref[...]        # zero per-image bottom-boundary rows

        # --- conv as ONE deep GEMM: taps stacked along lanes, bf16 in / f32 acc.
        taps = jnp.concatenate([s0, s1, s2, s3], axis=1).astype(jnp.bfloat16)
        acc = jnp.dot(taps, r_ref[...],
                      preferred_element_type=jnp.float32)            # (M, Wo*cs)

        # --- training-mode BatchNorm2d, stats folded over the Wo lane blocks
        # with VPU/XLU adds + lane tiling (no MXU fold/broadcast dots; beta's
        # column broadcast is a precomputed constant).
        col_sum = jnp.sum(acc, axis=0, keepdims=True)                # (1, Wo*cs)
        mean_c = _fold_lane_blocks(col_sum, wo, cs) * inv            # (1, cs)
        centered = acc - _tile_lane_blocks(mean_c, wo)
        sq_sum = jnp.sum(centered * centered, axis=0, keepdims=True)
        var_c = _fold_lane_blocks(sq_sum, wo, cs) * inv              # biased var
        scale_c = g_ref[...] * lax.rsqrt(var_c + BN_EPS)             # (1, cs)
        y = centered * _tile_lane_blocks(scale_c, wo) + sh_ref[...]
        if relu:
            y = jnp.maximum(y, 0.0)

        if li + 1 < n_layers:
            act_scratch[li][...] = y          # stays in VMEM for the next layer
            a_ref = act_scratch[li]
        else:
            out_ref[...] = y                  # single lane-dense f32 HBM store


def prepare_encoder(params, input_shape):
    """Pack conv weights + BN params into the operands of the fused kernel.

    Done once per parameter set.  Per layer:
      R      : (4*Wi*Ci, Wo*cs)  horizontal taps + zero pad + conv weights,
               pre-stacked over the 4 vertical taps (one GEMM per layer).
      mask0/3: (N*Ho, 1) 0/1 per-image vertical boundary masks (kh=0 / kh=3).
      gamma  : (1, cs)  BN weight, zero-padded channels stay exactly 0.
      shift  : (1, Wo*cs) BN bias pre-broadcast to the column layout.
    cs is padded so Wo*cs is a multiple of 128 (lane-dense activations).
    The conv bias is intentionally dropped: it cancels in training-mode BN.
    """
    N, Cin, H, W = input_shape
    n_layers = len(params)
    ops = []
    meta = []
    scratch_shapes = []
    Hi, Wi = H, W
    ci_slot = Cin      # padded lane slot width per W position
    ci_real = Cin
    for li, (w, _b, g, beta) in enumerate(params):
        w = np.asarray(w, np.float32)
        cout = int(w.shape[0])
        assert int(w.shape[1]) == ci_real
        Ho = (Hi + 2 * PAD - K_SIZE) // STRIDE + 1
        Wo = (Wi + 2 * PAD - K_SIZE) // STRIDE + 1
        assert Hi == STRIDE * Ho, "vertical tap slicing assumes Hi == 2*Ho"
        q = LANE // math.gcd(Wo, LANE)
        cs = ((cout + q - 1) // q) * q        # (Wo*cs) % 128 == 0
        M = N * Ho
        Lin = Wi * ci_slot

        r = np.zeros((K_SIZE, Lin, Wo * cs), np.float32)
        for kh in range(K_SIZE):
            for ow in range(Wo):
                for kw in range(K_SIZE):
                    win = STRIDE * ow + kw - PAD
                    if 0 <= win < Wi:
                        r[kh, win * ci_slot:win * ci_slot + ci_real,
                          ow * cs:ow * cs + cout] = w[:, :, kh, kw].T
        r_stacked = r.reshape(K_SIZE * Lin, Wo * cs)

        oh = np.arange(M) % Ho
        mask0 = (oh != 0).astype(np.float32).reshape(M, 1)
        mask3 = (oh != Ho - 1).astype(np.float32).reshape(M, 1)

        gvec = np.zeros((1, cs), np.float32)
        gvec[0, :cout] = np.asarray(g, np.float32)
        shift = np.zeros((1, Wo * cs), np.float32)
        for ow_ in range(Wo):
            shift[0, ow_ * cs:ow_ * cs + cout] = np.asarray(beta, np.float32)

        ops += [jnp.asarray(r_stacked, jnp.bfloat16),
                jnp.asarray(mask0), jnp.asarray(mask3),
                jnp.asarray(gvec), jnp.asarray(shift)]
        meta.append((M, Lin, Wo, cs, 1.0 / float(N * Ho * Wo),
                     li < n_layers - 1))
        if li < n_layers - 1:
            scratch_shapes.append(pltpu.VMEM((M, Wo * cs), jnp.float32))
        Hi, Wi, ci_slot, ci_real = Ho, Wo, cs, cout

    out_shape2d = (N * Hi, Wi * ci_slot)
    final_info = (Hi, Wi, ci_real, ci_slot)
    return tuple(ops), tuple(meta), tuple(scratch_shapes), out_shape2d, final_info


def conv_encoder_forward(x_nchw, packed):
    """Run the fused ConvEncoder forward (PyTorch-style NCHW input)."""
    ops, meta, scratch_shapes, out_shape2d, (Hf, Wf, Cf, Csf) = packed
    N, Cin, H, W = x_nchw.shape

    # Input as an (N*H, W*Cin) matrix -- no im2col expansion in HBM.
    # TODO(synk): at production sizes accept NHWC upstream (or fold the channel
    # interleave into the first layer's R) to avoid this extra HBM round trip.
    a0 = jnp.transpose(x_nchw, (0, 2, 3, 1)).reshape(N * H, W * Cin)
    a0 = a0.astype(jnp.float32)
    inputs = (a0,) + ops

    kernel = functools.partial(_encoder_kernel, meta=meta)
    vmem_spec = pl.BlockSpec(memory_space=pltpu.MemorySpace.VMEM)
    out = pl.pallas_call(
        kernel,
        out_shape=jax.ShapeDtypeStruct(out_shape2d, jnp.float32),
        in_specs=[vmem_spec] * len(inputs),    # whole arrays, no double-buffer
        out_specs=vmem_spec,
        scratch_shapes=list(scratch_shapes),
    )(*inputs)

    # Undo lane padding and reproduce torch.flatten(x, 1) on the NCHW output.
    out = out.reshape(N, Hf, Wf, Csf)[..., :Cf]
    out = jnp.transpose(out, (0, 3, 1, 2)).reshape(N, -1)
    return out


def reference_forward(x_nchw, params):
    """Pure-JAX reference mirroring the PyTorch module (training-mode BN, with
    conv bias).  Conv inputs are rounded to bf16 to mirror the kernel's MXU
    input precision; accumulation and BN math stay in f32."""
    act = x_nchw
    n_layers = len(params)
    for li, (w, b, g, beta) in enumerate(params):
        inp = act.astype(jnp.bfloat16).astype(jnp.float32)
        y = lax.conv_general_dilated(
            inp, w, window_strides=(STRIDE, STRIDE),
            padding=((PAD, PAD), (PAD, PAD)),
            dimension_numbers=("NCHW", "OIHW", "NCHW"),
            precision=lax.Precision.HIGHEST)
        y = y + b.reshape(1, -1, 1, 1)
        mean = jnp.mean(y, axis=(0, 2, 3), keepdims=True)
        var = jnp.mean((y - mean) ** 2, axis=(0, 2, 3), keepdims=True)
        y = (y - mean) * lax.rsqrt(var + BN_EPS)
        y = y * g.reshape(1, -1, 1, 1) + beta.reshape(1, -1, 1, 1)
        if li < n_layers - 1:
            y = jnp.maximum(y, 0.0)
        act = y
    return act.reshape(act.shape[0], -1)


def init_params(key, inchannels, outchannels):
    """Deterministic synthetic parameters for the 4 conv + BN blocks."""
    chans = [inchannels, outchannels // 8, outchannels // 4,
             outchannels // 2, outchannels]
    params = []
    for li in range(4):
        cin, cout = chans[li], chans[li + 1]
        key, kw, kb, kg, kbt = jax.random.split(key, 5)
        w = 0.1 * jax.random.normal(kw, (cout, cin, K_SIZE, K_SIZE), jnp.float32)
        # NOTE: kept bf16-representable (MXU input dtype); arbitrary f32
        # checkpoints would see extra bf16 weight-quantization error.
        w = w.astype(jnp.bfloat16).astype(jnp.float32)
        b = 0.05 * jax.random.normal(kb, (cout,), jnp.float32)
        g = 1.0 + 0.1 * jax.random.normal(kg, (cout,), jnp.float32)
        bt = 0.1 * jax.random.normal(kbt, (cout,), jnp.float32)
        params.append((w, b, g, bt))
    return params


if __name__ == "__main__":
    key = jax.random.PRNGKey(0)
    N, Cin, H, W = 2, 4, 16, 16
    outchannels = 32
    # latent_dim / stride / padding / downsample ctor args are unused in forward.

    kx, kp = jax.random.split(key)
    x = jax.random.normal(kx, (N, Cin, H, W), jnp.float32)
    x = x.astype(jnp.bfloat16).astype(jnp.float32)       # bf16-representable input
    params = init_params(kp, Cin, outchannels)

    packed = prepare_encoder(params, (N, Cin, H, W))
    out = conv_encoder_forward(x, packed)
    out = jax.block_until_ready(out)

    # 16 -> 8 -> 4 -> 2 -> 1 spatial; flatten gives (N, outchannels).
    assert out.shape == (N, outchannels), out.shape

    ref = reference_forward(x, params)
    err = float(jnp.max(jnp.abs(out - ref)))
    # Tolerance: bf16 MXU inputs are mirrored in the reference; the residual
    # gap is f32 accumulation-order noise, which the last BN (per-channel
    # statistics over only N*1*1 = 2 samples) can amplify by up to ~1/(2*sqrt(eps)).
    assert jnp.allclose(out, ref, atol=1e-2, rtol=1e-2), err

    print("KERNEL_OK")
</pallas_src>

<mosaic_0001>
module attributes {stable_mosaic.version = 11 : i64} {
  func.func @_encoder_kernel(%arg0: memref<32x64xf32, #tpu.memory_space<vmem>>, %arg1: memref<256x128xbf16, #tpu.memory_space<vmem>>, %arg2: memref<16x1xf32, #tpu.memory_space<vmem>>, %arg3: memref<16x1xf32, #tpu.memory_space<vmem>>, %arg4: memref<1x16xf32, #tpu.memory_space<vmem>>, %arg5: memref<1x128xf32, #tpu.memory_space<vmem>>, %arg6: memref<512x128xbf16, #tpu.memory_space<vmem>>, %arg7: memref<8x1xf32, #tpu.memory_space<vmem>>, %arg8: memref<8x1xf32, #tpu.memory_space<vmem>>, %arg9: memref<1x32xf32, #tpu.memory_space<vmem>>, %arg10: memref<1x128xf32, #tpu.memory_space<vmem>>, %arg11: memref<512x128xbf16, #tpu.memory_space<vmem>>, %arg12: memref<4x1xf32, #tpu.memory_space<vmem>>, %arg13: memref<4x1xf32, #tpu.memory_space<vmem>>, %arg14: memref<1x64xf32, #tpu.memory_space<vmem>>, %arg15: memref<1x128xf32, #tpu.memory_space<vmem>>, %arg16: memref<512x128xbf16, #tpu.memory_space<vmem>>, %arg17: memref<2x1xf32, #tpu.memory_space<vmem>>, %arg18: memref<2x1xf32, #tpu.memory_space<vmem>>, %arg19: memref<1x128xf32, #tpu.memory_space<vmem>>, %arg20: memref<1x128xf32, #tpu.memory_space<vmem>>, %arg21: memref<2x128xf32, #tpu.memory_space<vmem>>, %arg22: memref<16x128xf32, #tpu.memory_space<vmem>>, %arg23: memref<8x128xf32, #tpu.memory_space<vmem>>, %arg24: memref<4x128xf32, #tpu.memory_space<vmem>>) attributes {dimension_semantics = [], scalar_prefetch = 0 : i64, scratch_operands = 3 : i64, tpu.core_type = #tpu.core_type<tc>} {
    %cst = arith.constant 0.000000e+00 : f32
    %0 = vector.broadcast %cst : f32 to vector<1x64xf32>
    %c0 = arith.constant 0 : index
    %c0_0 = arith.constant 0 : index
    %1 = tpu.strided_load %arg0[%c0, %c0_0] {strides = array<i32: 2, 1>} : memref<32x64xf32, #tpu.memory_space<vmem>>, vector<16x64xf32>
    %c1 = arith.constant 1 : index
    %c0_1 = arith.constant 0 : index
    %2 = tpu.strided_load %arg0[%c1, %c0_1] {strides = array<i32: 2, 1>} : memref<32x64xf32, #tpu.memory_space<vmem>>, vector<16x64xf32>
    %c1_2 = arith.constant 1 : index
    %c0_3 = arith.constant 0 : index
    %3 = tpu.strided_load %arg0[%c1_2, %c0_3] {strides = array<i32: 2, 1>} : memref<32x64xf32, #tpu.memory_space<vmem>>, vector<15x64xf32>
    %4 = tpu.concatenate %0, %3 in 0 : vector<1x64xf32>, vector<15x64xf32> -> vector<16x64xf32>
    %c2 = arith.constant 2 : index
    %c0_4 = arith.constant 0 : index
    %5 = tpu.strided_load %arg0[%c2, %c0_4] {strides = array<i32: 2, 1>} : memref<32x64xf32, #tpu.memory_space<vmem>>, vector<15x64xf32>
    %6 = tpu.concatenate %5, %0 in 0 : vector<15x64xf32>, vector<1x64xf32> -> vector<16x64xf32>
    %c0_5 = arith.constant 0 : index
    %c0_6 = arith.constant 0 : index
    %7 = vector.load %arg2[%c0_5, %c0_6] : memref<16x1xf32, #tpu.memory_space<vmem>>, vector<16x1xf32>
    %8 = vector.broadcast %7 : vector<16x1xf32> to vector<16x64xf32>
    %9 = arith.mulf %4, %8 : vector<16x64xf32>
    %c0_7 = arith.constant 0 : index
    %c0_8 = arith.constant 0 : index
    %10 = vector.load %arg3[%c0_7, %c0_8] : memref<16x1xf32, #tpu.memory_space<vmem>>, vector<16x1xf32>
    %11 = vector.broadcast %10 : vector<16x1xf32> to vector<16x64xf32>
    %12 = arith.mulf %6, %11 : vector<16x64xf32>
    %13 = tpu.concatenate %9, %1, %2, %12 in 1 : vector<16x64xf32>, vector<16x64xf32>, vector<16x64xf32>, vector<16x64xf32> -> vector<16x256xf32>
    %14 = arith.truncf %13 : vector<16x256xf32> to vector<16x256xbf16>
    %c0_9 = arith.constant 0 : index
    %c0_10 = arith.constant 0 : index
    %15 = vector.load %arg1[%c0_9, %c0_10] : memref<256x128xbf16, #tpu.memory_space<vmem>>, vector<256x128xbf16>
    %cst_11 = arith.constant dense<0.000000e+00> : vector<16x128xf32>
    %16 = tpu.matmul %14, %15, %cst_11 {dimension_numbers = #tpu.dot_dimension_numbers<[1], [0], [0], [1], [0, 0, 1, 1], [], []>} : vector<16x256xbf16>, vector<256x128xbf16>, vector<16x128xf32> -> vector<16x128xf32>
    %cst_12 = arith.constant dense<0.000000e+00> : vector<128xf32>
    %17 = vector.multi_reduction <add>, %16, %cst_12 [0] : vector<16x128xf32> to vector<128xf32>
    %18 = vector.shape_cast %17 : vector<128xf32> to vector<1x128xf32>
    %19 = vector.extract_strided_slice %18 {offsets = [0, 0], sizes = [1, 16], strides = [1, 1]} : vector<1x128xf32> to vector<1x16xf32>
    %20 = vector.extract_strided_slice %18 {offsets = [0, 16], sizes = [1, 16], strides = [1, 1]} : vector<1x128xf32> to vector<1x16xf32>
    %21 = arith.addf %19, %20 : vector<1x16xf32>
    %22 = vector.extract_strided_slice %18 {offsets = [0, 32], sizes = [1, 16], strides = [1, 1]} : vector<1x128xf32> to vector<1x16xf32>
    %23 = arith.addf %21, %22 : vector<1x16xf32>
    %24 = vector.extract_strided_slice %18 {offsets = [0, 48], sizes = [1, 16], strides = [1, 1]} : vector<1x128xf32> to vector<1x16xf32>
    %25 = arith.addf %23, %24 : vector<1x16xf32>
    %26 = vector.extract_strided_slice %18 {offsets = [0, 64], sizes = [1, 16], strides = [1, 1]} : vector<1x128xf32> to vector<1x16xf32>
    %27 = arith.addf %25, %26 : vector<1x16xf32>
    %28 = vector.extract_strided_slice %18 {offsets = [0, 80], sizes = [1, 16], strides = [1, 1]} : vector<1x128xf32> to vector<1x16xf32>
    %29 = arith.addf %27, %28 : vector<1x16xf32>
    %30 = vector.extract_strided_slice %18 {offsets = [0, 96], sizes = [1, 16], strides = [1, 1]} : vector<1x128xf32> to vector<1x16xf32>
    %31 = arith.addf %29, %30 : vector<1x16xf32>
    %32 = vector.extract_strided_slice %18 {offsets = [0, 112], sizes = [1, 16], strides = [1, 1]} : vector<1x128xf32> to vector<1x16xf32>
    %33 = arith.addf %31, %32 : vector<1x16xf32>
    %cst_13 = arith.constant 7.812500e-03 : f32
    %34 = vector.broadcast %cst_13 : f32 to vector<1x16xf32>
    %35 = arith.mulf %33, %34 : vector<1x16xf32>
    %36 = tpu.concatenate %35, %35, %35, %35, %35, %35, %35, %35 in 1 : vector<1x16xf32>, vector<1x16xf32>, vector<1x16xf32>, vector<1x16xf32>, vector<1x16xf32>, vector<1x16xf32>, vector<1x16xf32>, vector<1x16xf32> -> vector<1x128xf32>
    %37 = vector.broadcast %36 : vector<1x128xf32> to vector<16x128xf32>
    %38 = arith.subf %16, %37 : vector<16x128xf32>
    %39 = arith.mulf %38, %38 : vector<16x128xf32>
    %cst_14 = arith.constant dense<0.000000e+00> : vector<128xf32>
    %40 = vector.multi_reduction <add>, %39, %cst_14 [0] : vector<16x128xf32> to vector<128xf32>
    %41 = vector.shape_cast %40 : vector<128xf32> to vector<1x128xf32>
    %42 = vector.extract_strided_slice %41 {offsets = [0, 0], sizes = [1, 16], strides = [1, 1]} : vector<1x128xf32> to vector<1x16xf32>
    %43 = vector.extract_strided_slice %41 {offsets = [0, 16], sizes = [1, 16], strides = [1, 1]} : vector<1x128xf32> to vector<1x16xf32>
    %44 = arith.addf %42, %43 : vector<1x16xf32>
    %45 = vector.extract_strided_slice %41 {offsets = [0, 32], sizes = [1, 16], strides = [1, 1]} : vector<1x128xf32> to vector<1x16xf32>
    %46 = arith.addf %44, %45 : vector<1x16xf32>
    %47 = vector.extract_strided_slice %41 {offsets = [0, 48], sizes = [1, 16], strides = [1, 1]} : vector<1x128xf32> to vector<1x16xf32>
    %48 = arith.addf %46, %47 : vector<1x16xf32>
    %49 = vector.extract_strided_slice %41 {offsets = [0, 64], sizes = [1, 16], strides = [1, 1]} : vector<1x128xf32> to vector<1x16xf32>
    %50 = arith.addf %48, %49 : vector<1x16xf32>
    %51 = vector.extract_strided_slice %41 {offsets = [0, 80], sizes = [1, 16], strides = [1, 1]} : vector<1x128xf32> to vector<1x16xf32>
    %52 = arith.addf %50, %51 : vector<1x16xf32>
    %53 = vector.extract_strided_slice %41 {offsets = [0, 96], sizes = [1, 16], strides = [1, 1]} : vector<1x128xf32> to vector<1x16xf32>
    %54 = arith.addf %52, %53 : vector<1x16xf32>
    %55 = vector.extract_strided_slice %41 {offsets = [0, 112], sizes = [1, 16], strides = [1, 1]} : vector<1x128xf32> to vector<1x16xf32>
    %56 = arith.addf %54, %55 : vector<1x16xf32>
    %cst_15 = arith.constant 7.812500e-03 : f32
    %57 = vector.broadcast %cst_15 : f32 to vector<1x16xf32>
    %58 = arith.mulf %56, %57 : vector<1x16xf32>
    %c0_16 = arith.constant 0 : index
    %c0_17 = arith.constant 0 : index
    %59 = vector.load %arg4[%c0_16, %c0_17] : memref<1x16xf32, #tpu.memory_space<vmem>>, vector<1x16xf32>
    %cst_18 = arith.constant 9.99999974E-6 : f32
    %60 = vector.broadcast %cst_18 : f32 to vector<1x16xf32>
    %61 = arith.addf %58, %60 : vector<1x16xf32>
    %62 = math.rsqrt %61 : vector<1x16xf32>
    %63 = arith.mulf %59, %62 : vector<1x16xf32>
    %64 = tpu.concatenate %63, %63, %63, %63, %63, %63, %63, %63 in 1 : vector<1x16xf32>, vector<1x16xf32>, vector<1x16xf32>, vector<1x16xf32>, vector<1x16xf32>, vector<1x16xf32>, vector<1x16xf32>, vector<1x16xf32> -> vector<1x128xf32>
    %65 = vector.broadcast %64 : vector<1x128xf32> to vector<16x128xf32>
    %66 = arith.mulf %38, %65 : vector<16x128xf32>
    %c0_19 = arith.constant 0 : index
    %c0_20 = arith.constant 0 : index
    %67 = vector.load %arg5[%c0_19, %c0_20] : memref<1x128xf32, #tpu.memory_space<vmem>>, vector<1x128xf32>
    %68 = vector.broadcast %67 : vector<1x128xf32> to vector<16x128xf32>
    %69 = arith.addf %66, %68 : vector<16x128xf32>
    %cst_21 = arith.constant 0.000000e+00 : f32
    %70 = vector.broadcast %cst_21 : f32 to vector<16x128xf32>
    %71 = arith.maximumf %69, %70 : vector<16x128xf32>
    %c0_22 = arith.constant 0 : index
    %c0_23 = arith.constant 0 : index
    %72 = vector.load %arg22[%c0_22, %c0_23] : memref<16x128xf32, #tpu.memory_space<vmem>>, vector<16x128xf32>
    tpu.vector_store %arg22[%c0_22, %c0_23], %71 {strides = array<i32>} : memref<16x128xf32, #tpu.memory_space<vmem>>, vector<16x128xf32>,
    %cst_24 = arith.constant 0.000000e+00 : f32
    %73 = vector.broadcast %cst_24 : f32 to vector<1x128xf32>
    %c0_25 = arith.constant 0 : index
    %c0_26 = arith.constant 0 : index
    %74 = tpu.strided_load %arg22[%c0_25, %c0_26] {strides = array<i32: 2, 1>} : memref<16x128xf32, #tpu.memory_space<vmem>>, vector<8x128xf32>
    %c1_27 = arith.constant 1 : index
    %c0_28 = arith.constant 0 : index
    %75 = tpu.strided_load %arg22[%c1_27, %c0_28] {strides = array<i32: 2, 1>} : memref<16x128xf32, #tpu.memory_space<vmem>>, vector<8x128xf32>
    %c1_29 = arith.constant 1 : index
    %c0_30 = arith.constant 0 : index
    %76 = tpu.strided_load %arg22[%c1_29, %c0_30] {strides = array<i32: 2, 1>} : memref<16x128xf32, #tpu.memory_space<vmem>>, vector<7x128xf32>
    %77 = tpu.concatenate %73, %76 in 0 : vector<1x128xf32>, vector<7x128xf32> -> vector<8x128xf32>
    %c2_31 = arith.constant 2 : index
    %c0_32 = arith.constant 0 : index
    %78 = tpu.strided_load %arg22[%c2_31, %c0_32] {strides = array<i32: 2, 1>} : memref<16x128xf32, #tpu.memory_space<vmem>>, vector<7x128xf32>
    %79 = tpu.concatenate %78, %73 in 0 : vector<7x128xf32>, vector<1x128xf32> -> vector<8x128xf32>
    %c0_33 = arith.constant 0 : index
    %c0_34 = arith.constant 0 : index
    %80 = vector.load %arg7[%c0_33, %c0_34] : memref<8x1xf32, #tpu.memory_space<vmem>>, vector<8x1xf32>
    %81 = vector.broadcast %80 : vector<8x1xf32> to vector<8x128xf32>
    %82 = arith.mulf %77, %81 : vector<8x128xf32>
    %c0_35 = arith.constant 0 : index
    %c0_36 = arith.constant 0 : index
    %83 = vector.load %arg8[%c0_35, %c0_36] : memref<8x1xf32, #tpu.memory_space<vmem>>, vector<8x1xf32>
    %84 = vector.broadcast %83 : vector<8x1xf32> to vector<8x128xf32>
    %85 = arith.mulf %79, %84 : vector<8x128xf32>
    %86 = tpu.concatenate %82, %74, %75, %85 in 1 : vector<8x128xf32>, vector<8x128xf32>, vector<8x128xf32>, vector<8x128xf32> -> vector<8x512xf32>
    %87 = arith.truncf %86 : vector<8x512xf32> to vector<8x512xbf16>
    %c0_37 = arith.constant 0 : index
    %c0_38 = arith.constant 0 : index
    %88 = vector.load %arg6[%c0_37, %c0_38] : memref<512x128xbf16, #tpu.memory_space<vmem>>, vector<512x128xbf16>
    %cst_39 = arith.constant dense<0.000000e+00> : vector<8x128xf32>
    %89 = tpu.matmul %87, %88, %cst_39 {dimension_numbers = #tpu.dot_dimension_numbers<[1], [0], [0], [1], [0, 0, 1, 1], [], []>} : vector<8x512xbf16>, vector<512x128xbf16>, vector<8x128xf32> -> vector<8x128xf32>
    %cst_40 = arith.constant dense<0.000000e+00> : vector<128xf32>
    %90 = vector.multi_reduction <add>, %89, %cst_40 [0] : vector<8x128xf32> to vector<128xf32>
    %91 = vector.shape_cast %90 : vector<128xf32> to vector<1x128xf32>
    %92 = vector.extract_strided_slice %91 {offsets = [0, 0], sizes = [1, 32], strides = [1, 1]} : vector<1x128xf32> to vector<1x32xf32>
    %93 = vector.extract_strided_slice %91 {offsets = [0, 32], sizes = [1, 32], strides = [1, 1]} : vector<1x128xf32> to vector<1x32xf32>
    %94 = arith.addf %92, %93 : vector<1x32xf32>
    %95 = vector.extract_strided_slice %91 {offsets = [0, 64], sizes = [1, 32], strides = [1, 1]} : vector<1x128xf32> to vector<1x32xf32>
    %96 = arith.addf %94, %95 : vector<1x32xf32>
    %97 = vector.extract_strided_slice %91 {offsets = [0, 96], sizes = [1, 32], strides = [1, 1]} : vector<1x128xf32> to vector<1x32xf32>
    %98 = arith.addf %96, %97 : vector<1x32xf32>
    %cst_41 = arith.constant 3.125000e-02 : f32
    %99 = vector.broadcast %cst_41 : f32 to vector<1x32xf32>
    %100 = arith.mulf %98, %99 : vector<1x32xf32>
    %101 = tpu.concatenate %100, %100, %100, %100 in 1 : vector<1x32xf32>, vector<1x32xf32>, vector<1x32xf32>, vector<1x32xf32> -> vector<1x128xf32>
    %102 = vector.broadcast %101 : vector<1x128xf32> to vector<8x128xf32>
    %103 = arith.subf %89, %102 : vector<8x128xf32>
    %104 = arith.mulf %103, %103 : vector<8x128xf32>
    %cst_42 = arith.constant dense<0.000000e+00> : vector<128xf32>
    %105 = vector.multi_reduction <add>, %104, %cst_42 [0] : vector<8x128xf32> to vector<128xf32>
    %106 = vector.shape_cast %105 : vector<128xf32> to vector<1x128xf32>
    %107 = vector.extract_strided_slice %106 {offsets = [0, 0], sizes = [1, 32], strides = [1, 1]} : vector<1x128xf32> to vector<1x32xf32>
    %108 = vector.extract_strided_slice %106 {offsets = [0, 32], sizes = [1, 32], strides = [1, 1]} : vector<1x128xf32> to vector<1x32xf32>
    %109 = arith.addf %107, %108 : vector<1x32xf32>
    %110 = vector.extract_strided_slice %106 {offsets = [0, 64], sizes = [1, 32], strides = [1, 1]} : vector<1x128xf32> to vector<1x32xf32>
    %111 = arith.addf %109, %110 : vector<1x32xf32>
    %112 = vector.extract_strided_slice %106 {offsets = [0, 96], sizes = [1, 32], strides = [1, 1]} : vector<1x128xf32> to vector<1x32xf32>
    %113 = arith.addf %111, %112 : vector<1x32xf32>
    %cst_43 = arith.constant 3.125000e-02 : f32
    %114 = vector.broadcast %cst_43 : f32 to vector<1x32xf32>
    %115 = arith.mulf %113, %114 : vector<1x32xf32>
    %c0_44 = arith.constant 0 : index
    %c0_45 = arith.constant 0 : index
    %116 = vector.load %arg9[%c0_44, %c0_45] : memref<1x32xf32, #tpu.memory_space<vmem>>, vector<1x32xf32>
    %cst_46 = arith.constant 9.99999974E-6 : f32
    %117 = vector.broadcast %cst_46 : f32 to vector<1x32xf32>
    %118 = arith.addf %115, %117 : vector<1x32xf32>
    %119 = math.rsqrt %118 : vector<1x32xf32>
    %120 = arith.mulf %116, %119 : vector<1x32xf32>
    %121 = tpu.concatenate %120, %120, %120, %120 in 1 : vector<1x32xf32>, vector<1x32xf32>, vector<1x32xf32>, vector<1x32xf32> -> vector<1x128xf32>
    %122 = vector.broadcast %121 : vector<1x128xf32> to vector<8x128xf32>
    %123 = arith.mulf %103, %122 : vector<8x128xf32>
    %c0_47 = arith.constant 0 : index
    %c0_48 = arith.constant 0 : index
    %124 = vector.load %arg10[%c0_47, %c0_48] : memref<1x128xf32, #tpu.memory_space<vmem>>, vector<1x128xf32>
    %125 = vector.broadcast %124 : vector<1x128xf32> to vector<8x128xf32>
    %126 = arith.addf %123, %125 : vector<8x128xf32>
    %cst_49 = arith.constant 0.000000e+00 : f32
    %127 = vector.broadcast %cst_49 : f32 to vector<8x128xf32>
    %128 = arith.maximumf %126, %127 : vector<8x128xf32>
    %c0_50 = arith.constant 0 : index
    %c0_51 = arith.constant 0 : index
    %129 = vector.load %arg23[%c0_50, %c0_51] : memref<8x128xf32, #tpu.memory_space<vmem>>, vector<8x128xf32>
    tpu.vector_store %arg23[%c0_50, %c0_51], %128 {strides = array<i32>} : memref<8x128xf32, #tpu.memory_space<vmem>>, vector<8x128xf32>,
    %cst_52 = arith.constant 0.000000e+00 : f32
    %130 = vector.broadcast %cst_52 : f32 to vector<1x128xf32>
    %c0_53 = arith.constant 0 : index
    %c0_54 = arith.constant 0 : index
    %131 = tpu.strided_load %arg23[%c0_53, %c0_54] {strides = array<i32: 2, 1>} : memref<8x128xf32, #tpu.memory_space<vmem>>, vector<4x128xf32>
    %c1_55 = arith.constant 1 : index
    %c0_56 = arith.constant 0 : index
    %132 = tpu.strided_load %arg23[%c1_55, %c0_56] {strides = array<i32: 2, 1>} : memref<8x128xf32, #tpu.memory_space<vmem>>, vector<4x128xf32>
    %c1_57 = arith.constant 1 : index
    %c0_58 = arith.constant 0 : index
    %133 = tpu.strided_load %arg23[%c1_57, %c0_58] {strides = array<i32: 2, 1>} : memref<8x128xf32, #tpu.memory_space<vmem>>, vector<3x128xf32>
    %134 = tpu.concatenate %130, %133 in 0 : vector<1x128xf32>, vector<3x128xf32> -> vector<4x128xf32>
    %c2_59 = arith.constant 2 : index
    %c0_60 = arith.constant 0 : index
    %135 = tpu.strided_load %arg23[%c2_59, %c0_60] {strides = array<i32: 2, 1>} : memref<8x128xf32, #tpu.memory_space<vmem>>, vector<3x128xf32>
    %136 = tpu.concatenate %135, %130 in 0 : vector<3x128xf32>, vector<1x128xf32> -> vector<4x128xf32>
    %c0_61 = arith.constant 0 : index
    %c0_62 = arith.constant 0 : index
    %137 = vector.load %arg12[%c0_61, %c0_62] : memref<4x1xf32, #tpu.memory_space<vmem>>, vector<4x1xf32>
    %138 = vector.broadcast %137 : vector<4x1xf32> to vector<4x128xf32>
    %139 = arith.mulf %134, %138 : vector<4x128xf32>
    %c0_63 = arith.constant 0 : index
    %c0_64 = arith.constant 0 : index
    %140 = vector.load %arg13[%c0_63, %c0_64] : memref<4x1xf32, #tpu.memory_space<vmem>>, vector<4x1xf32>
    %141 = vector.broadcast %140 : vector<4x1xf32> to vector<4x128xf32>
    %142 = arith.mulf %136, %141 : vector<4x128xf32>
    %143 = tpu.concatenate %139, %131, %132, %142 in 1 : vector<4x128xf32>, vector<4x128xf32>, vector<4x128xf32>, vector<4x128xf32> -> vector<4x512xf32>
    %144 = arith.truncf %143 : vector<4x512xf32> to vector<4x512xbf16>
    %c0_65 = arith.constant 0 : index
    %c0_66 = arith.constant 0 : index
    %145 = vector.load %arg11[%c0_65, %c0_66] : memref<512x128xbf16, #tpu.memory_space<vmem>>, vector<512x128xbf16>
    %cst_67 = arith.constant dense<0.000000e+00> : vector<4x128xf32>
    %146 = tpu.matmul %144, %145, %cst_67 {dimension_numbers = #tpu.dot_dimension_numbers<[1], [0], [0], [1], [0, 0, 1, 1], [], []>} : vector<4x512xbf16>, vector<512x128xbf16>, vector<4x128xf32> -> vector<4x128xf32>
    %cst_68 = arith.constant dense<0.000000e+00> : vector<128xf32>
    %147 = vector.multi_reduction <add>, %146, %cst_68 [0] : vector<4x128xf32> to vector<128xf32>
    %148 = vector.shape_cast %147 : vector<128xf32> to vector<1x128xf32>
    %149 = vector.extract_strided_slice %148 {offsets = [0, 0], sizes = [1, 64], strides = [1, 1]} : vector<1x128xf32> to vector<1x64xf32>
    %150 = vector.extract_strided_slice %148 {offsets = [0, 64], sizes = [1, 64], strides = [1, 1]} : vector<1x128xf32> to vector<1x64xf32>
    %151 = arith.addf %149, %150 : vector<1x64xf32>
    %cst_69 = arith.constant 1.250000e-01 : f32
    %152 = vector.broadcast %cst_69 : f32 to vector<1x64xf32>
    %153 = arith.mulf %151, %152 : vector<1x64xf32>
    %154 = tpu.concatenate %153, %153 in 1 : vector<1x64xf32>, vector<1x64xf32> -> vector<1x128xf32>
    %155 = vector.broadcast %154 : vector<1x128xf32> to vector<4x128xf32>
    %156 = arith.subf %146, %155 : vector<4x128xf32>
    %157 = arith.mulf %156, %156 : vector<4x128xf32>
    %cst_70 = arith.constant dense<0.000000e+00> : vector<128xf32>
    %158 = vector.multi_reduction <add>, %157, %cst_70 [0] : vector<4x128xf32> to vector<128xf32>
    %159 = vector.shape_cast %158 : vector<128xf32> to vector<1x128xf32>
    %160 = vector.extract_strided_slice %159 {offsets = [0, 0], sizes = [1, 64], strides = [1, 1]} : vector<1x128xf32> to vector<1x64xf32>
    %161 = vector.extract_strided_slice %159 {offsets = [0, 64], sizes = [1, 64], strides = [1, 1]} : vector<1x128xf32> to vector<1x64xf32>
    %162 = arith.addf %160, %161 : vector<1x64xf32>
    %cst_71 = arith.constant 1.250000e-01 : f32
    %163 = vector.broadcast %cst_71 : f32 to vector<1x64xf32>
    %164 = arith.mulf %162, %163 : vector<1x64xf32>
    %c0_72 = arith.constant 0 : index
    %c0_73 = arith.constant 0 : index
    %165 = vector.load %arg14[%c0_72, %c0_73] : memref<1x64xf32, #tpu.memory_space<vmem>>, vector<1x64xf32>
    %cst_74 = arith.constant 9.99999974E-6 : f32
    %166 = vector.broadcast %cst_74 : f32 to vector<1x64xf32>
    %167 = arith.addf %164, %166 : vector<1x64xf32>
    %168 = math.rsqrt %167 : vector<1x64xf32>
    %169 = arith.mulf %165, %168 : vector<1x64xf32>
    %170 = tpu.concatenate %169, %169 in 1 : vector<1x64xf32>, vector<1x64xf32> -> vector<1x128xf32>
    %171 = vector.broadcast %170 : vector<1x128xf32> to vector<4x128xf32>
    %172 = arith.mulf %156, %171 : vector<4x128xf32>
    %c0_75 = arith.constant 0 : index
    %c0_76 = arith.constant 0 : index
    %173 = vector.load %arg15[%c0_75, %c0_76] : memref<1x128xf32, #tpu.memory_space<vmem>>, vector<1x128xf32>
    %174 = vector.broadcast %173 : vector<1x128xf32> to vector<4x128xf32>
    %175 = arith.addf %172, %174 : vector<4x128xf32>
    %cst_77 = arith.constant 0.000000e+00 : f32
    %176 = vector.broadcast %cst_77 : f32 to vector<4x128xf32>
    %177 = arith.maximumf %175, %176 : vector<4x128xf32>
    %c0_78 = arith.constant 0 : index
    %c0_79 = arith.constant 0 : index
    %178 = vector.load %arg24[%c0_78, %c0_79] : memref<4x128xf32, #tpu.memory_space<vmem>>, vector<4x128xf32>
    tpu.vector_store %arg24[%c0_78, %c0_79], %177 {strides = array<i32>} : memref<4x128xf32, #tpu.memory_space<vmem>>, vector<4x128xf32>,
    %cst_80 = arith.constant 0.000000e+00 : f32
    %179 = vector.broadcast %cst_80 : f32 to vector<1x128xf32>
    %c0_81 = arith.constant 0 : index
    %c0_82 = arith.constant 0 : index
    %180 = tpu.strided_load %arg24[%c0_81, %c0_82] {strides = array<i32: 2, 1>} : memref<4x128xf32, #tpu.memory_space<vmem>>, vector<2x128xf32>
    %c1_83 = arith.constant 1 : index
    %c0_84 = arith.constant 0 : index
    %181 = tpu.strided_load %arg24[%c1_83, %c0_84] {strides = array<i32: 2, 1>} : memref<4x128xf32, #tpu.memory_space<vmem>>, vector<2x128xf32>
    %c1_85 = arith.constant 1 : index
    %c0_86 = arith.constant 0 : index
    %182 = tpu.strided_load %arg24[%c1_85, %c0_86] {strides = array<i32: 2, 1>} : memref<4x128xf32, #tpu.memory_space<vmem>>, vector<1x128xf32>
    %183 = tpu.concatenate %179, %182 in 0 : vector<1x128xf32>, vector<1x128xf32> -> vector<2x128xf32>
    %c2_87 = arith.constant 2 : index
    %c0_88 = arith.constant 0 : index
    %184 = tpu.strided_load %arg24[%c2_87, %c0_88] {strides = array<i32: 2, 1>} : memref<4x128xf32, #tpu.memory_space<vmem>>, vector<1x128xf32>
    %185 = tpu.concatenate %184, %179 in 0 : vector<1x128xf32>, vector<1x128xf32> -> vector<2x128xf32>
    %c0_89 = arith.constant 0 : index
    %c0_90 = arith.constant 0 : index
    %186 = vector.load %arg17[%c0_89, %c0_90] : memref<2x1xf32, #tpu.memory_space<vmem>>, vector<2x1xf32>
    %187 = vector.broadcast %186 : vector<2x1xf32> to vector<2x128xf32>
    %188 = arith.mulf %183, %187 : vector<2x128xf32>
    %c0_91 = arith.constant 0 : index
    %c0_92 = arith.constant 0 : index
    %189 = vector.load %arg18[%c0_91, %c0_92] : memref<2x1xf32, #tpu.memory_space<vmem>>, vector<2x1xf32>
    %190 = vector.broadcast %189 : vector<2x1xf32> to vector<2x128xf32>
    %191 = arith.mulf %185, %190 : vector<2x128xf32>
    %192 = tpu.concatenate %188, %180, %181, %191 in 1 : vector<2x128xf32>, vector<2x128xf32>, vector<2x128xf32>, vector<2x128xf32> -> vector<2x512xf32>
    %193 = arith.truncf %192 : vector<2x512xf32> to vector<2x512xbf16>
    %c0_93 = arith.constant 0 : index
    %c0_94 = arith.constant 0 : index
    %194 = vector.load %arg16[%c0_93, %c0_94] : memref<512x128xbf16, #tpu.memory_space<vmem>>, vector<512x128xbf16>
    %cst_95 = arith.constant dense<0.000000e+00> : vector<2x128xf32>
    %195 = tpu.matmul %193, %194, %cst_95 {dimension_numbers = #tpu.dot_dimension_numbers<[1], [0], [0], [1], [0, 0, 1, 1], [], []>} : vector<2x512xbf16>, vector<512x128xbf16>, vector<2x128xf32> -> vector<2x128xf32>
    %cst_96 = arith.constant dense<0.000000e+00> : vector<128xf32>
    %196 = vector.multi_reduction <add>, %195, %cst_96 [0] : vector<2x128xf32> to vector<128xf32>
    %197 = vector.shape_cast %196 : vector<128xf32> to vector<1x128xf32>
    %cst_97 = arith.constant 5.000000e-01 : f32
    %198 = vector.broadcast %cst_97 : f32 to vector<1x128xf32>
    %199 = arith.mulf %197, %198 : vector<1x128xf32>
    %200 = vector.broadcast %199 : vector<1x128xf32> to vector<2x128xf32>
    %201 = arith.subf %195, %200 : vector<2x128xf32>
    %202 = arith.mulf %201, %201 : vector<2x128xf32>
    %cst_98 = arith.constant dense<0.000000e+00> : vector<128xf32>
    %203 = vector.multi_reduction <add>, %202, %cst_98 [0] : vector<2x128xf32> to vector<128xf32>
    %204 = vector.shape_cast %203 : vector<128xf32> to vector<1x128xf32>
    %cst_99 = arith.constant 5.000000e-01 : f32
    %205 = vector.broadcast %cst_99 : f32 to vector<1x128xf32>
    %206 = arith.mulf %204, %205 : vector<1x128xf32>
    %c0_100 = arith.constant 0 : index
    %c0_101 = arith.constant 0 : index
    %207 = vector.load %arg19[%c0_100, %c0_101] : memref<1x128xf32, #tpu.memory_space<vmem>>, vector<1x128xf32>
    %cst_102 = arith.constant 9.99999974E-6 : f32
    %208 = vector.broadcast %cst_102 : f32 to vector<1x128xf32>
    %209 = arith.addf %206, %208 : vector<1x128xf32>
    %210 = math.rsqrt %209 : vector<1x128xf32>
    %211 = arith.mulf %207, %210 : vector<1x128xf32>
    %212 = vector.broadcast %211 : vector<1x128xf32> to vector<2x128xf32>
    %213 = arith.mulf %201, %212 : vector<2x128xf32>
    %c0_103 = arith.constant 0 : index
    %c0_104 = arith.constant 0 : index
    %214 = vector.load %arg20[%c0_103, %c0_104] : memref<1x128xf32, #tpu.memory_space<vmem>>, vector<1x128xf32>
    %215 = vector.broadcast %214 : vector<1x128xf32> to vector<2x128xf32>
    %216 = arith.addf %213, %215 : vector<2x128xf32>
    %c0_105 = arith.constant 0 : index
    %c0_106 = arith.constant 0 : index
    %217 = vector.load %arg21[%c0_105, %c0_106] : memref<2x128xf32, #tpu.memory_space<vmem>>, vector<2x128xf32>
    tpu.vector_store %arg21[%c0_105, %c0_106], %216 {strides = array<i32>} : memref<2x128xf32, #tpu.memory_space<vmem>>, vector<2x128xf32>,
    return
  }
}

</mosaic_0001>

<llo_original>
// kernel: tpu_custom_call.1
$region0: #{tpu_custom_call.1}
  #allocation0 [shape = 'u32[]', space=smem, size = 0x4, offset = 0x4, fixed_abs, tag = 'smem constant byte address 0x4 - core index']
  #allocation1 [shape = 'u32[144,128]{1,0:T(1,128)}', space=vmem, size = 0x12000, scoped, tag = 'internal scratch']
  #allocation2 [shape = 'f32[16,128]{1,0:T(8,128)}', space=vmem, size = 0x2000, scoped, tag = 'scratch operand']
  #allocation3 [shape = 'f32[8,128]{1,0:T(8,128)}', space=vmem, size = 0x1000, scoped, tag = 'scratch operand']
  #allocation4 [shape = 'f32[4,128]{1,0:T(4,128)}', space=vmem, size = 0x800, scoped, tag = 'scratch operand']
  %s0 = inlined_call_operand.vmem [shape: f32[32,64], index: 0, kind: input, shape index: {}]
  %s1 = inlined_call_operand.hbm [shape: bf16[256,128], index: 1, kind: input, shape index: {}]
  %s2 = inlined_call_operand.vmem [shape: f32[16,1], index: 2, kind: input, shape index: {}]
  %s3 = inlined_call_operand.vmem [shape: f32[16,1], index: 3, kind: input, shape index: {}]
  %s4 = inlined_call_operand.vmem [shape: f32[1,16], index: 4, kind: input, shape index: {}]
  %s5 = inlined_call_operand.vmem [shape: f32[1,128], index: 5, kind: input, shape index: {}]
  %s6 = inlined_call_operand.hbm [shape: bf16[512,128], index: 6, kind: input, shape index: {}]
  %s7 = inlined_call_operand.vmem [shape: f32[8,1], index: 7, kind: input, shape index: {}]
  %s8 = inlined_call_operand.vmem [shape: f32[8,1], index: 8, kind: input, shape index: {}]
  %s9 = inlined_call_operand.vmem [shape: f32[1,32], index: 9, kind: input, shape index: {}]
  %s10 = inlined_call_operand.vmem [shape: f32[1,128], index: 10, kind: input, shape index: {}]
  %s11 = inlined_call_operand.hbm [shape: bf16[512,128], index: 11, kind: input, shape index: {}]
  %s12 = inlined_call_operand.vmem [shape: f32[4,1], index: 12, kind: input, shape index: {}]
  %s13 = inlined_call_operand.vmem [shape: f32[4,1], index: 13, kind: input, shape index: {}]
  %s14 = inlined_call_operand.vmem [shape: f32[1,64], index: 14, kind: input, shape index: {}]
  %s15 = inlined_call_operand.vmem [shape: f32[1,128], index: 15, kind: input, shape index: {}]
  %s16 = inlined_call_operand.hbm [shape: bf16[512,128], index: 16, kind: input, shape index: {}]
  %s17 = inlined_call_operand.vmem [shape: f32[2,1], index: 17, kind: input, shape index: {}]
  %s18 = inlined_call_operand.vmem [shape: f32[2,1], index: 18, kind: input, shape index: {}]
  %s19 = inlined_call_operand.vmem [shape: f32[1,128], index: 19, kind: input, shape index: {}]
  %s20 = inlined_call_operand.vmem [shape: f32[1,128], index: 20, kind: input, shape index: {}]
  %s21 = inlined_call_operand.hbm [shape: f32[2,128], index: 21, kind: output, shape index: {}]
  %s22 = sld [smem:[#allocation0]]
  $region110: #{tpu_custom_call.1} parent=0
    _
  %s24 = ssub.s32 1, %s22
  %s25 = scalar_select 0, %s24, %s22
  $region1: #{tpu_custom_call.1} parent=0
    #allocation5 [shape = 'u8[65536]{0}', space=vmem, size = 0x10000, scoped, tag = 'input window, operand 1, single buffered']
    #allocation6 [shape = 's32[1]{0}', space=sflag, size = 0x4, scoped, tag = 'scoped memory for tpu_custom_call.1']
    #allocation7 [shape = 's32[1]{0}', space=sflag, size = 0x4, scoped, tag = 'scoped memory for tpu_custom_call.1']
    #allocation8 [shape = 'u8[131072]{0}', space=vmem, size = 0x20000, scoped, tag = 'input window, operand 6, single buffered']
    #allocation9 [shape = 's32[1]{0}', space=sflag, size = 0x4, scoped, tag = 'scoped memory for tpu_custom_call.1']
    #allocation10 [shape = 'u8[131072]{0}', space=vmem, size = 0x20000, scoped, tag = 'input window, operand 11, single buffered']
    #allocation11 [shape = 'u8[131072]{0}', space=vmem, size = 0x20000, scoped, tag = 'input window, operand 16, single buffered']
    #allocation12 [shape = 's32[1]{0}', space=sflag, size = 0x4, scoped, tag = 'scoped memory for tpu_custom_call.1']
    #allocation13 [shape = 'u8[1024]{0}', space=vmem, size = 0x400, scoped, tag = 'output window, operand 0, single buffered']
    %26 = vsyncpa [#allocation6], 0
    %27 = vsyncpa [#allocation9], 0
    %28 = vsyncpa [#allocation12], 0
    %29 = vsyncpa [#allocation7], 0
    // Predicated region
    $region2: #{tpu_custom_call.1} parent=1 // pred_check
      _
    $region3: #{tpu_custom_call.1} parent=1 // pred_check_branch
      %31 = sbr.rel (0) target = $region5
    $region4: #{tpu_custom_call.1} parent=1 // pred_region
      _
    $region5: #{tpu_custom_call.1} parent=1 // pred_fallthru
      _
    // Predicated region
    $region6: #{tpu_custom_call.1} parent=1 // pred_check
      _
    $region7: #{tpu_custom_call.1} parent=1 // pred_check_branch
      %33 = sbr.rel (0) target = $region9
    $region8: #{tpu_custom_call.1} parent=1 // pred_region
      %s35 = ssub.s32 2048, 2048
      %36 = vsyncadd [#allocation6], %s35
      %s37 = sshll.u32 [#allocation5], 4
      %s38 = int_to_ptr.vmem [resolvable:$true] %s37
      %43 = dma.hbm_to_vmem [thread:$0]  %s1, 2048, %s38, [#allocation6], 64, 64, 4
    $region9: #{tpu_custom_call.1} parent=1 // pred_fallthru
      _
    // Predicated region
    $region10: #{tpu_custom_call.1} parent=1 // pred_check
      _
    $region11: #{tpu_custom_call.1} parent=1 // pred_check_branch
      %45 = sbr.rel (0) target = $region13
    $region12: #{tpu_custom_call.1} parent=1 // pred_region
      _
    $region13: #{tpu_custom_call.1} parent=1 // pred_fallthru
      _
    // Predicated region
    $region14: #{tpu_custom_call.1} parent=1 // pred_check
      _
    $region15: #{tpu_custom_call.1} parent=1 // pred_check_branch
      %47 = sbr.rel (0) target = $region17
    $region16: #{tpu_custom_call.1} parent=1 // pred_region
      _
    $region17: #{tpu_custom_call.1} parent=1 // pred_fallthru
      _
    // Predicated region
    $region18: #{tpu_custom_call.1} parent=1 // pred_check
      _
    $region19: #{tpu_custom_call.1} parent=1 // pred_check_branch
      %49 = sbr.rel (0) target = $region21
    $region20: #{tpu_custom_call.1} parent=1 // pred_region
      _
    $region21: #{tpu_custom_call.1} parent=1 // pred_fallthru
      _
    // Predicated region
    $region22: #{tpu_custom_call.1} parent=1 // pred_check
      _
    $region23: #{tpu_custom_call.1} parent=1 // pred_check_branch
      %51 = sbr.rel (0) target = $region25
    $region24: #{tpu_custom_call.1} parent=1 // pred_region
      _
    $region25: #{tpu_custom_call.1} parent=1 // pred_fallthru
      _
    // Predicated region
    $region26: #{tpu_custom_call.1} parent=1 // pred_check
      _
    $region27: #{tpu_custom_call.1} parent=1 // pred_check_branch
      %53 = sbr.rel (0) target = $region29
    $region28: #{tpu_custom_call.1} parent=1 // pred_region
      %s55 = ssub.s32 4096, 4096
      %56 = vsyncadd [#allocation9], %s55
      %s57 = sshll.u32 [#allocation8], 4
      %s58 = int_to_ptr.vmem [resolvable:$true] %s57
      %63 = dma.hbm_to_vmem [thread:$0]  %s6, 4096, %s58, [#allocation9], 64, 64, 4
    $region29: #{tpu_custom_call.1} parent=1 // pred_fallthru
      _
    // Predicated region
    $region30: #{tpu_custom_call.1} parent=1 // pred_check
      _
    $region31: #{tpu_custom_call.1} parent=1 // pred_check_branch
      %65 = sbr.rel (0) target = $region33
    $region32: #{tpu_custom_call.1} parent=1 // pred_region
      _
    $region33: #{tpu_custom_call.1} parent=1 // pred_fallthru
      _
    // Predicated region
    $region34: #{tpu_custom_call.1} parent=1 // pred_check
      _
    $region35: #{tpu_custom_call.1} parent=1 // pred_check_branch
      %67 = sbr.rel (0) target = $region37
    $region36: #{tpu_custom_call.1} parent=1 // pred_region
      _
    $region37: #{tpu_custom_call.1} parent=1 // pred_fallthru
      _
    // Predicated region
    $region38: #{tpu_custom_call.1} parent=1 // pred_check
      _
    $region39: #{tpu_custom_call.1} parent=1 // pred_check_branch
      %69 = sbr.rel (0) target = $region41
    $region40: #{tpu_custom_call.1} parent=1 // pred_region
      _
    $region41: #{tpu_custom_call.1} parent=1 // pred_fallthru
      _
    // Predicated region
    $region42: #{tpu_custom_call.1} parent=1 // pred_check
      _
    $region43: #{tpu_custom_call.1} parent=1 // pred_check_branch
      %71 = sbr.rel (0) target = $region45
    $region44: #{tpu_custom_call.1} parent=1 // pred_region
      _
    $region45: #{tpu_custom_call.1} parent=1 // pred_fallthru
      _
    // Predicated region
    $region46: #{tpu_custom_call.1} parent=1 // pred_check
      _
    $region47: #{tpu_custom_call.1} parent=1 // pred_check_branch
      %73 = sbr.rel (0) target = $region49
    $region48: #{tpu_custom_call.1} parent=1 // pred_region
      %s75 = ssub.s32 4096, 4096
      %76 = vsyncadd [#allocation9], %s75
      %s77 = sshll.u32 [#allocation10], 4
      %s78 = int_to_ptr.vmem [resolvable:$true] %s77
      %83 = dma.hbm_to_vmem [thread:$0]  %s11, 4096, %s78, [#allocation9], 64, 64, 4
    $region49: #{tpu_custom_call.1} parent=1 // pred_fallthru
      _
    // Predicated region
    $region50: #{tpu_custom_call.1} parent=1 // pred_check
      _
    $region51: #{tpu_custom_call.1} parent=1 // pred_check_branch
      %85 = sbr.rel (0) target = $region53
    $region52: #{tpu_custom_call.1} parent=1 // pred_region
      _
    $region53: #{tpu_custom_call.1} parent=1 // pred_fallthru
      _
    // Predicated region
    $region54: #{tpu_custom_call.1} parent=1 // pred_check
      _
    $region55: #{tpu_custom_call.1} parent=1 // pred_check_branch
      %87 = sbr.rel (0) target = $region57
    $region56: #{tpu_custom_call.1} parent=1 // pred_region
      _
    $region57: #{tpu_custom_call.1} parent=1 // pred_fallthru
      _
    // Predicated region
    $region58: #{tpu_custom_call.1} parent=1 // pred_check
      _
    $region59: #{tpu_custom_call.1} parent=1 // pred_check_branch
      %89 = sbr.rel (0) target = $region61
    $region60: #{tpu_custom_call.1} parent=1 // pred_region
      _
    $region61: #{tpu_custom_call.1} parent=1 // pred_fallthru
      _
    // Predicated region
    $region62: #{tpu_custom_call.1} parent=1 // pred_check
      _
    $region63: #{tpu_custom_call.1} parent=1 // pred_check_branch
      %91 = sbr.rel (0) target = $region65
    $region64: #{tpu_custom_call.1} parent=1 // pred_region
      _
    $region65: #{tpu_custom_call.1} parent=1 // pred_fallthru
      _
    // Predicated region
    $region66: #{tpu_custom_call.1} parent=1 // pred_check
      _
    $region67: #{tpu_custom_call.1} parent=1 // pred_check_branch
      %93 = sbr.rel (0) target = $region69
    $region68: #{tpu_custom_call.1} parent=1 // pred_region
      %s95 = ssub.s32 4096, 4096
      %96 = vsyncadd [#allocation12], %s95
      %s97 = sshll.u32 [#allocation11], 4
      %s98 = int_to_ptr.vmem [resolvable:$true] %s97
      %103 = dma.hbm_to_vmem [thread:$0]  %s16, 4096, %s98, [#allocation12], 64, 64, 4
    $region69: #{tpu_custom_call.1} parent=1 // pred_fallthru
      _
    // Predicated region
    $region70: #{tpu_custom_call.1} parent=1 // pred_check
      _
    $region71: #{tpu_custom_call.1} parent=1 // pred_check_branch
      %105 = sbr.rel (0) target = $region73
    $region72: #{tpu_custom_call.1} parent=1 // pred_region
      _
    $region73: #{tpu_custom_call.1} parent=1 // pred_fallthru
      _
    // Predicated region
    $region74: #{tpu_custom_call.1} parent=1 // pred_check
      _
    $region75: #{tpu_custom_call.1} parent=1 // pred_check_branch
      %107 = sbr.rel (0) target = $region77
    $region76: #{tpu_custom_call.1} parent=1 // pred_region
      _
    $region77: #{tpu_custom_call.1} parent=1 // pred_fallthru
      _
    // Predicated region
    $region78: #{tpu_custom_call.1} parent=1 // pred_check
      _
    $region79: #{tpu_custom_call.1} parent=1 // pred_check_branch
      %109 = sbr.rel (0) target = $region81
    $region80: #{tpu_custom_call.1} parent=1 // pred_region
      _
    $region81: #{tpu_custom_call.1} parent=1 // pred_fallthru
      _
    // Predicated region
    $region82: #{tpu_custom_call.1} parent=1 // pred_check
      _
    $region83: #{tpu_custom_call.1} parent=1 // pred_check_branch
      %111 = sbr.rel (0) target = $region85
    $region84: #{tpu_custom_call.1} parent=1 // pred_region
      _
    $region85: #{tpu_custom_call.1} parent=1 // pred_fallthru
      _
    // Predicated region
    $region86: #{tpu_custom_call.1} parent=1 // pred_check
      _
    $region87: #{tpu_custom_call.1} parent=1 // pred_check_branch
      %113 = sbr.rel (0) target = $region89
    $region88: #{tpu_custom_call.1} parent=1 // pred_region
      %114 = dma.done [#allocation6], 2048
    $region89: #{tpu_custom_call.1} parent=1 // pred_fallthru
      _
    // Predicated region
    $region90: #{tpu_custom_call.1} parent=1 // pred_check
      _
    $region91: #{tpu_custom_call.1} parent=1 // pred_check_branch
      %116 = sbr.rel (0) target = $region93
    $region92: #{tpu_custom_call.1} parent=1 // pred_region
      %117 = dma.done [#allocation9], 4096
    $region93: #{tpu_custom_call.1} parent=1 // pred_fallthru
      _
    // Predicated region
    $region94: #{tpu_custom_call.1} parent=1 // pred_check
      _
    $region95: #{tpu_custom_call.1} parent=1 // pred_check_branch
      %119 = sbr.rel (0) target = $region97
    $region96: #{tpu_custom_call.1} parent=1 // pred_region
      %120 = dma.done [#allocation9], 4096
    $region97: #{tpu_custom_call.1} parent=1 // pred_fallthru
      _
    // Predicated region
    $region98: #{tpu_custom_call.1} parent=1 // pred_check
      _
    $region99: #{tpu_custom_call.1} parent=1 // pred_check_branch
      %122 = sbr.rel (0) target = $region101
    $region100: #{tpu_custom_call.1} parent=1 // pred_region
      %123 = dma.done [#allocation12], 4096
    $region101: #{tpu_custom_call.1} parent=1 // pred_fallthru
      _
    %v125 = vld [vmem:[%s0] ss:$2 sm:$0xff]
    %s126 = scalar_lea.vmem %s0, 16
    %v127 = vld [vmem:[%s126] ss:$2 sm:$0xff]
    %s128 = scalar_lea.vmem %s0, 1
    %v129 = vld [vmem:[%s128] ss:$2 sm:$0xff]
    %s130 = scalar_lea.vmem %s0, 17
    %v131 = vld [vmem:[%s130] ss:$2 sm:$0xff]
    %v132 = vld [vmem:[%s130] ss:$2 sm:$0x7f]
    %vm135 = vcmask 1040384
    %v136 = vrot.slane %v129, 7
    %v137 = vrot.slane %v132, 7
    %v138 = vsel %vm135, %v136, %v137
    %v141 = vsel %vm135, 0.0, %v136
    %s142 = scalar_lea.vmem %s0, 2
    %v143 = vld [vmem:[%s142] ss:$2 sm:$0xff]
    %s144 = scalar_lea.vmem %s0, 18
    %v145 = vld [vmem:[%s144] ss:$2 sm:$0x7f]
    %vm146 = vcmask 1046528
    %v147 = vsel %vm146, %v145, 0.0
    %v148 = vld [vmem:[%s2] sm:$0xff]
    %v149 = vld [vmem:[%s2 + $0x8] sm:$0xff]
    %151 = vset.pattern.permute.xlu0 0
    %152 = vperm.xlu0 %151, %v148
    %v153 = vpop.permute.xlu0 %152
    %156 = vset.pattern.permute.xlu0 0
    %157 = vperm.xlu0 %156, %v149
    %v158 = vpop.permute.xlu0 %157
    %v160 = vmul.f32 %v141, %v153
    %v161 = vmul.f32 %v138, %v158
    %v162 = vld [vmem:[%s3] sm:$0xff]
    %v163 = vld [vmem:[%s3 + $0x8] sm:$0xff]
    %165 = vset.pattern.permute.xlu0 0
    %166 = vperm.xlu0 %165, %v162
    %v167 = vpop.permute.xlu0 %166
    %170 = vset.pattern.permute.xlu0 0
    %171 = vperm.xlu0 %170, %v163
    %v172 = vpop.permute.xlu0 %171
    %v174 = vmul.f32 %v143, %v167
    %v175 = vmul.f32 %v147, %v172
    %178 = vrot.lane.b32.xlu0 %v125, 64
    %v179 = vpop.permute.xlu0 %178
    %180 = vrot.lane.b32.xlu0 %v127, 64
    %v181 = vpop.permute.xlu0 %180
    %186 = vrot.lane.b32.xlu0 %v174, 64
    %v187 = vpop.permute.xlu0 %186
    %188 = vrot.lane.b32.xlu0 %v175, 64
    %v189 = vpop.permute.xlu0 %188
    %vm192 = vcmask 523264
    %v193 = vsel %vm192, %v160, %v179
    %v194 = vsel %vm192, %v161, %v181
    %v195 = vsel %vm192, %v129, %v187
    %v196 = vsel %vm192, %v131, %v189
    %v197 = vpack.c.bf16 %v194, %v193
    %v198 = vpack.c.bf16 %v196, %v195
    %v199 = vld [vmem:[#allocation5] sm:$0xf]
    %v200 = vld [vmem:[#allocation5 + $0x4] sm:$0xf]
    %v201 = vld [vmem:[#allocation5 + $0x8] sm:$0xf]
    %v202 = vld [vmem:[#allocation5 + $0xc] sm:$0xf]
    %v203 = vld [vmem:[#allocation5 + $0x10] sm:$0xf]
    %v204 = vld [vmem:[#allocation5 + $0x14] sm:$0xf]
    %v205 = vld [vmem:[#allocation5 + $0x18] sm:$0xf]
    %v206 = vld [vmem:[#allocation5 + $0x1c] sm:$0xf]
    %v207 = vld [vmem:[#allocation5 + $0x20] sm:$0xf]
    %v208 = vld [vmem:[#allocation5 + $0x24] sm:$0xf]
    %v209 = vld [vmem:[#allocation5 + $0x28] sm:$0xf]
    %v210 = vld [vmem:[#allocation5 + $0x2c] sm:$0xf]
    %v211 = vld [vmem:[#allocation5 + $0x30] sm:$0xf]
    %v212 = vld [vmem:[#allocation5 + $0x34] sm:$0xf]
    %v213 = vld [vmem:[#allocation5 + $0x38] sm:$0xf]
    %v214 = vld [vmem:[#allocation5 + $0x3c] sm:$0xf]
    %v215 = vld [vmem:[#allocation5 + $0x40] sm:$0xf]
    %v216 = vld [vmem:[#allocation5 + $0x44] sm:$0xf]
    %v217 = vld [vmem:[#allocation5 + $0x48] sm:$0xf]
    %v218 = vld [vmem:[#allocation5 + $0x4c] sm:$0xf]
    %v219 = vld [vmem:[#allocation5 + $0x50] sm:$0xf]
    %v220 = vld [vmem:[#allocation5 + $0x54] sm:$0xf]
    %v221 = vld [vmem:[#allocation5 + $0x58] sm:$0xf]
    %v222 = vld [vmem:[#allocation5 + $0x5c] sm:$0xf]
    %v223 = vld [vmem:[#allocation5 + $0x60] sm:$0xf]
    %v224 = vld [vmem:[#allocation5 + $0x64] sm:$0xf]
    %v225 = vld [vmem:[#allocation5 + $0x68] sm:$0xf]
    %v226 = vld [vmem:[#allocation5 + $0x6c] sm:$0xf]
    %v227 = vld [vmem:[#allocation5 + $0x70] sm:$0xf]
    %v228 = vld [vmem:[#allocation5 + $0x74] sm:$0xf]
    %v229 = vld [vmem:[#allocation5 + $0x78] sm:$0xf]
    %v230 = vld [vmem:[#allocation5 + $0x7c] sm:$0xf]
    %v263 = vunpack.c.l.b16 %v199
    %v264 = vunpack.c.l.b16 %v200
    %v265 = vunpack.c.l.b16 %v201
    %v266 = vunpack.c.l.b16 %v202
    %v267 = vunpack.c.l.b16 %v203
    %v268 = vunpack.c.l.b16 %v204
    %v269 = vunpack.c.l.b16 %v205
    %v270 = vunpack.c.l.b16 %v206
    %v271 = vunpack.c.l.b16 %v207
    %v272 = vunpack.c.l.b16 %v208
    %v273 = vunpack.c.l.b16 %v209
    %v274 = vunpack.c.l.b16 %v210
    %v275 = vunpack.c.l.b16 %v211
    %v276 = vunpack.c.l.b16 %v212
    %v277 = vunpack.c.l.b16 %v213
    %v278 = vunpack.c.l.b16 %v214
    %v279 = vunpack.c.l.b16 %v215
    %v280 = vunpack.c.l.b16 %v216
    %v281 = vunpack.c.l.b16 %v217
    %v282 = vunpack.c.l.b16 %v218
    %v283 = vunpack.c.l.b16 %v219
    %v284 = vunpack.c.l.b16 %v220
    %v285 = vunpack.c.l.b16 %v221
    %v286 = vunpack.c.l.b16 %v222
    %v287 = vunpack.c.l.b16 %v223
    %v288 = vunpack.c.l.b16 %v224
    %v289 = vunpack.c.l.b16 %v225
    %v290 = vunpack.c.l.b16 %v226
    %v291 = vunpack.c.l.b16 %v227
    %v292 = vunpack.c.l.b16 %v228
    %v293 = vunpack.c.l.b16 %v229
    %v294 = vunpack.c.l.b16 %v230
    %v295 = vpack.c.b16 %v264, %v263
    %v296 = vpack.c.b16 %v266, %v265
    %v297 = vpack.c.b16 %v268, %v267
    %v298 = vpack.c.b16 %v270, %v269
    %v299 = vpack.c.b16 %v272, %v271
    %v300 = vpack.c.b16 %v274, %v273
    %v301 = vpack.c.b16 %v276, %v275
    %v302 = vpack.c.b16 %v278, %v277
    %v303 = vpack.c.b16 %v280, %v279
    %v304 = vpack.c.b16 %v282, %v281
    %v305 = vpack.c.b16 %v284, %v283
    %v306 = vpack.c.b16 %v286, %v285
    %v307 = vpack.c.b16 %v288, %v287
    %v308 = vpack.c.b16 %v290, %v289
    %v309 = vpack.c.b16 %v292, %v291
    %v310 = vpack.c.b16 %v294, %v293
    %327 = vmatprep.subr.bf16.mxu0 0
    %328 = vmatpush1.bf16.msra.mxu0 %v295
    %329 = vmatprep.subr.bf16.mxu0 0
    %330 = vmatpush1.bf16.msra.mxu0 %v296
    %331 = vmatprep.subr.bf16.mxu0 0
    %332 = vmatpush1.bf16.msra.mxu0 %v297
    %333 = vmatprep.subr.bf16.mxu0 0
    %334 = vmatpush1.bf16.msra.mxu0 %v298
    %335 = vmatprep.subr.bf16.mxu0 0
    %336 = vmatpush1.bf16.msra.mxu0 %v299
    %337 = vmatprep.subr.bf16.mxu0 0
    %338 = vmatpush1.bf16.msra.mxu0 %v300
    %339 = vmatprep.subr.bf16.mxu0 0
    %340 = vmatpush1.bf16.msra.mxu0 %v301
    %341 = vmatprep.subr.bf16.mxu0 0
    %342 = vmatpush1.bf16.msra.mxu0 %v302
    %343 = vmatprep.subr.bf16.mxu0 0
    %344 = vmatpush1.bf16.msra.mxu0 %v303
    %345 = vmatprep.subr.bf16.mxu0 0
    %346 = vmatpush1.bf16.msra.mxu0 %v304
    %347 = vmatprep.subr.bf16.mxu0 0
    %348 = vmatpush1.bf16.msra.mxu0 %v305
    %349 = vmatprep.subr.bf16.mxu0 0
    %350 = vmatpush1.bf16.msra.mxu0 %v306
    %351 = vmatprep.subr.bf16.mxu0 0
    %352 = vmatpush1.bf16.msra.mxu0 %v307
    %353 = vmatprep.subr.bf16.mxu0 0
    %354 = vmatpush1.bf16.msra.mxu0 %v308
    %355 = vmatprep.subr.bf16.mxu0 0
    %356 = vmatpush1.bf16.msra.mxu0 %v309
    %357 = vmatprep.subr.bf16.mxu0 0
    %358 = vmatpush1.bf16.msra.mxu0 %v310
    %359 = vmatprep.mubr.bf16.mxu0 %v198
    %360 = vmatmul.mubr.bf16.gmra.mrb[0].mxu0 %v197
    %v361 = vpop.f32.mrb[0].mxu0
    %v362 = vadd.f32 0.0, %v361
    %v363 = vpop.f32.mrb[0].mxu0
    %v364 = vpop.f32.mrb[0].mxu0
    %v365 = vadd.f32 0.0, %v364
    %v366 = vpop.f32.mrb[0].mxu0
    %367 = vdwg.mxu0
    %v368 = vadd.f32 %v362, %v365
    %v369 = vrot.slane %v368, 4
    %v370 = vadd.f32 %v368, %v369
    %v371 = vrot.slane %v370, 2
    %v372 = vadd.f32 %v370, %v371
    %v373 = vrot.slane %v372, 1
    %v374 = vadd.f32 %v372, %v373
    %376 = vrot.lane.b32.xlu0 %v374, 112
    %v377 = vpop.permute.xlu0 %376
    %v379 = vadd.f32 %v374, %v377
    %380 = vrot.lane.b32.xlu0 %v374, 96
    %v381 = vpop.permute.xlu0 %380
    %v383 = vadd.f32 %v379, %v381
    %384 = vrot.lane.b32.xlu0 %v374, 80
    %v385 = vpop.permute.xlu0 %384
    %v387 = vadd.f32 %v383, %v385
    %388 = vrot.lane.b32.xlu0 %v374, 64
    %v389 = vpop.permute.xlu0 %388
    %v391 = vadd.f32 %v387, %v389
    %392 = vrot.lane.b32.xlu0 %v374, 48
    %v393 = vpop.permute.xlu0 %392
    %v395 = vadd.f32 %v391, %v393
    %396 = vrot.lane.b32.xlu0 %v374, 32
    %v397 = vpop.permute.xlu0 %396
    %v399 = vadd.f32 %v395, %v397
    %400 = vrot.lane.b32.xlu0 %v374, 16
    %v401 = vpop.permute.xlu0 %400
    %v403 = vadd.f32 %v399, %v401
    %v404 = vmul.f32 %v403, 0.0078125
    %406 = vrot.lane.b32.xlu0 %v404, 16
    %v407 = vpop.permute.xlu0 %406
    %409 = vrot.lane.b32.xlu0 %v404, 32
    %v410 = vpop.permute.xlu0 %409
    %412 = vrot.lane.b32.xlu0 %v404, 48
    %v413 = vpop.permute.xlu0 %412
    %415 = vrot.lane.b32.xlu0 %v404, 64
    %v416 = vpop.permute.xlu0 %415
    %418 = vrot.lane.b32.xlu0 %v404, 80
    %v419 = vpop.permute.xlu0 %418
    %421 = vrot.lane.b32.xlu0 %v404, 96
    %v422 = vpop.permute.xlu0 %421
    %424 = vrot.lane.b32.xlu0 %v404, 112
    %v425 = vpop.permute.xlu0 %424
    %vm427 = vcmask 130048
    %v428 = vsel %vm427, %v404, %v407
    %vm429 = vcmask 261120
    %v430 = vsel %vm429, %v428, %v410
    %vm431 = vcmask 392192
    %v432 = vsel %vm431, %v430, %v413
    %v433 = vsel %vm192, %v432, %v416
    %vm434 = vcmask 654336
    %v435 = vsel %vm434, %v433, %v419
    %vm436 = vcmask 785408
    %v437 = vsel %vm436, %v435, %v422
    %vm438 = vcmask 916480
    %v439 = vsel %vm438, %v437, %v425
    %v440 = vlaneseq
    %v441 = vshrl.u32 %v440, 7
    %v442 = vsub.s32 0, %v441
    %v443 = vrot.slane %v439, %v442
    %v444 = vsub.f32 %v362, %v443
    %v445 = vsub.f32 %v365, %v443
    %v446 = vmul.f32 %v444, %v444
    %v447 = vmul.f32 %v445, %v445
    %v448 = vadd.f32 %v446, %v447
    %v449 = vrot.slane %v448, 4
    %v450 = vadd.f32 %v448, %v449
    %v451 = vrot.slane %v450, 2
    %v452 = vadd.f32 %v450, %v451
    %v453 = vrot.slane %v452, 1
    %v454 = vadd.f32 %v452, %v453
    %456 = vrot.lane.b32.xlu0 %v454, 112
    %v457 = vpop.permute.xlu0 %456
    %v459 = vadd.f32 %v454, %v457
    %460 = vrot.lane.b32.xlu0 %v454, 96
    %v461 = vpop.permute.xlu0 %460
    %v463 = vadd.f32 %v459, %v461
    %464 = vrot.lane.b32.xlu0 %v454, 80
    %v465 = vpop.permute.xlu0 %464
    %v467 = vadd.f32 %v463, %v465
    %468 = vrot.lane.b32.xlu0 %v454, 64
    %v469 = vpop.permute.xlu0 %468
    %v471 = vadd.f32 %v467, %v469
    %472 = vrot.lane.b32.xlu0 %v454, 48
    %v473 = vpop.permute.xlu0 %472
    %v475 = vadd.f32 %v471, %v473
    %476 = vrot.lane.b32.xlu0 %v454, 32
    %v477 = vpop.permute.xlu0 %476
    %v479 = vadd.f32 %v475, %v477
    %480 = vrot.lane.b32.xlu0 %v454, 16
    %v481 = vpop.permute.xlu0 %480
    %v483 = vadd.f32 %v479, %v481
    %v484 = vmul.f32 %v483, 0.0078125
    %v485 = vld [vmem:[%s4] sm:$0x1]
    %v486 = vadd.f32 %v484, 1e-05
    %v487 = vrsqrt.pop %v486
    %v488 = vmul.f32 %v485, %v487
    %v490 = vlaneseq
    %v491 = vshrl.u32 %v490, 7
    %v492 = vsub.s32 0, %v491
    %v493 = vrot.slane %v488, %v492
    %494 = vrot.lane.b32.xlu0 %v493, 16
    %v495 = vpop.permute.xlu0 %494
    %497 = vrot.lane.b32.xlu0 %v493, 32
    %v498 = vpop.permute.xlu0 %497
    %500 = vrot.lane.b32.xlu0 %v493, 48
    %v501 = vpop.permute.xlu0 %500
    %503 = vrot.lane.b32.xlu0 %v493, 64
    %v504 = vpop.permute.xlu0 %503
    %506 = vrot.lane.b32.xlu0 %v493, 80
    %v507 = vpop.permute.xlu0 %506
    %509 = vrot.lane.b32.xlu0 %v493, 96
    %v510 = vpop.permute.xlu0 %509
    %512 = vrot.lane.b32.xlu0 %v493, 112
    %v513 = vpop.permute.xlu0 %512
    %v515 = vsel %vm427, %v488, %v495
    %v516 = vsel %vm429, %v515, %v498
    %v517 = vsel %vm431, %v516, %v501
    %v518 = vsel %vm192, %v517, %v504
    %v519 = vsel %vm434, %v518, %v507
    %v520 = vsel %vm436, %v519, %v510
    %v521 = vsel %vm438, %v520, %v513
    %v522 = vlaneseq
    %v523 = vshrl.u32 %v522, 7
    %v524 = vsub.s32 0, %v523
    %v525 = vrot.slane %v521, %v524
    %v526 = vmul.f32 %v444, %v525
    %v527 = vmul.f32 %v445, %v525
    %v528 = vld [vmem:[%s5] sm:$0x1]
    %v530 = vlaneseq
    %v531 = vshrl.u32 %v530, 7
    %v532 = vsub.s32 0, %v531
    %v533 = vrot.slane %v528, %v532
    %v535 = vadd.f32 %v526, %v533
    %v536 = vadd.f32 %v527, %v533
    %v537 = vmax.f32 %v535, 0.0
    %v538 = vmax.f32 %v536, 0.0
    %539 = vst [vmem:[#allocation2] sm:$0xff] %v537
    %540 = vst [vmem:[#allocation2 + $0x8] sm:$0xff] %v538
    %v541 = vld [vmem:[#allocation2] ss:$2 sm:$0xff]
    %s542 = scalar_lea.vmem [#allocation2], 1
    %v543 = vld [vmem:[%s542] ss:$2 sm:$0xff]
    %v544 = vld [vmem:[%s542] ss:$2 sm:$0x7f]
    %v546 = vrot.slane %v544, 7
    %v548 = vsel %vm135, 0.0, %v546
    %s549 = scalar_lea.vmem [#allocation2], 2
    %v550 = vld [vmem:[%s549] ss:$2 sm:$0x7f]
    %v551 = vsel %vm146, %v550, 0.0
    %v552 = vld [vmem:[%s7] sm:$0xff]
    %554 = vset.pattern.permute.xlu0 0
    %555 = vperm.xlu0 %554, %v552
    %v556 = vpop.permute.xlu0 %555
    %v558 = vmul.f32 %v548, %v556
    %v559 = vld [vmem:[%s8] sm:$0xff]
    %561 = vset.pattern.permute.xlu0 0
    %562 = vperm.xlu0 %561, %v559
    %v563 = vpop.permute.xlu0 %562
    %v565 = vmul.f32 %v551, %v563
    %v566 = vpack.c.bf16 %v558, %v558
    %v567 = vpack.c.bf16 %v541, %v541
    %v568 = vpack.c.bf16 %v543, %v543
    %v569 = vpack.c.bf16 %v565, %v565
    %v570 = vld [vmem:[#allocation8] sm:$0xf]
    %v571 = vld [vmem:[#allocation8 + $0x4] sm:$0xf]
    %v572 = vld [vmem:[#allocation8 + $0x8] sm:$0xf]
    %v573 = vld [vmem:[#allocation8 + $0xc] sm:$0xf]
    %v574 = vld [vmem:[#allocation8 + $0x10] sm:$0xf]
    %v575 = vld [vmem:[#allocation8 + $0x14] sm:$0xf]
    %v576 = vld [vmem:[#allocation8 + $0x18] sm:$0xf]
    %v577 = vld [vmem:[#allocation8 + $0x1c] sm:$0xf]
    %v578 = vld [vmem:[#allocation8 + $0x20] sm:$0xf]
    %v579 = vld [vmem:[#allocation8 + $0x24] sm:$0xf]
    %v580 = vld [vmem:[#allocation8 + $0x28] sm:$0xf]
    %v581 = vld [vmem:[#allocation8 + $0x2c] sm:$0xf]
    %v582 = vld [vmem:[#allocation8 + $0x30] sm:$0xf]
    %v583 = vld [vmem:[#allocation8 + $0x34] sm:$0xf]
    %v584 = vld [vmem:[#allocation8 + $0x38] sm:$0xf]
    %v585 = vld [vmem:[#allocation8 + $0x3c] sm:$0xf]
    %v586 = vld [vmem:[#allocation8 + $0x40] sm:$0xf]
    %v587 = vld [vmem:[#allocation8 + $0x44] sm:$0xf]
    %v588 = vld [vmem:[#allocation8 + $0x48] sm:$0xf]
    %v589 = vld [vmem:[#allocation8 + $0x4c] sm:$0xf]
    %v590 = vld [vmem:[#allocation8 + $0x50] sm:$0xf]
    %v591 = vld [vmem:[#allocation8 + $0x54] sm:$0xf]
    %v592 = vld [vmem:[#allocation8 + $0x58] sm:$0xf]
    %v593 = vld [vmem:[#allocation8 + $0x5c] sm:$0xf]
    %v594 = vld [vmem:[#allocation8 + $0x60] sm:$0xf]
    %v595 = vld [vmem:[#allocation8 + $0x64] sm:$0xf]
    %v596 = vld [vmem:[#allocation8 + $0x68] sm:$0xf]
    %v597 = vld [vmem:[#allocation8 + $0x6c] sm:$0xf]
    %v598 = vld [vmem:[#allocation8 + $0x70] sm:$0xf]
    %v599 = vld [vmem:[#allocation8 + $0x74] sm:$0xf]
    %v600 = vld [vmem:[#allocation8 + $0x78] sm:$0xf]
    %v601 = vld [vmem:[#allocation8 + $0x7c] sm:$0xf]
    %v602 = vld [vmem:[#allocation8 + $0x80] sm:$0xf]
    %v603 = vld [vmem:[#allocation8 + $0x84] sm:$0xf]
    %v604 = vld [vmem:[#allocation8 + $0x88] sm:$0xf]
    %v605 = vld [vmem:[#allocation8 + $0x8c] sm:$0xf]
    %v606 = vld [vmem:[#allocation8 + $0x90] sm:$0xf]
    %v607 = vld [vmem:[#allocation8 + $0x94] sm:$0xf]
    %v608 = vld [vmem:[#allocation8 + $0x98] sm:$0xf]
    %v609 = vld [vmem:[#allocation8 + $0x9c] sm:$0xf]
    %v610 = vld [vmem:[#allocation8 + $0xa0] sm:$0xf]
    %v611 = vld [vmem:[#allocation8 + $0xa4] sm:$0xf]
    %v612 = vld [vmem:[#allocation8 + $0xa8] sm:$0xf]
    %v613 = vld [vmem:[#allocation8 + $0xac] sm:$0xf]
    %v614 = vld [vmem:[#allocation8 + $0xb0] sm:$0xf]
    %v615 = vld [vmem:[#allocation8 + $0xb4] sm:$0xf]
    %v616 = vld [vmem:[#allocation8 + $0xb8] sm:$0xf]
    %v617 = vld [vmem:[#allocation8 + $0xbc] sm:$0xf]
    %v618 = vld [vmem:[#allocation8 + $0xc0] sm:$0xf]
    %v619 = vld [vmem:[#allocation8 + $0xc4] sm:$0xf]
    %v620 = vld [vmem:[#allocation8 + $0xc8] sm:$0xf]
    %v621 = vld [vmem:[#allocation8 + $0xcc] sm:$0xf]
    %v622 = vld [vmem:[#allocation8 + $0xd0] sm:$0xf]
    %v623 = vld [vmem:[#allocation8 + $0xd4] sm:$0xf]
    %v624 = vld [vmem:[#allocation8 + $0xd8] sm:$0xf]
    %v625 = vld [vmem:[#allocation8 + $0xdc] sm:$0xf]
    %v626 = vld [vmem:[#allocation8 + $0xe0] sm:$0xf]
    %v627 = vld [vmem:[#allocation8 + $0xe4] sm:$0xf]
    %v628 = vld [vmem:[#allocation8 + $0xe8] sm:$0xf]
    %v629 = vld [vmem:[#allocation8 + $0xec] sm:$0xf]
    %v630 = vld [vmem:[#allocation8 + $0xf0] sm:$0xf]
    %v631 = vld [vmem:[#allocation8 + $0xf4] sm:$0xf]
    %v632 = vld [vmem:[#allocation8 + $0xf8] sm:$0xf]
    %v633 = vld [vmem:[#allocation8 + $0xfc] sm:$0xf]
    %v698 = vunpack.c.l.b16 %v570
    %v699 = vunpack.c.l.b16 %v571
    %v700 = vunpack.c.l.b16 %v572
    %v701 = vunpack.c.l.b16 %v573
    %v702 = vunpack.c.l.b16 %v574
    %v703 = vunpack.c.l.b16 %v575
    %v704 = vunpack.c.l.b16 %v576
    %v705 = vunpack.c.l.b16 %v577
    %v706 = vunpack.c.l.b16 %v578
    %v707 = vunpack.c.l.b16 %v579
    %v708 = vunpack.c.l.b16 %v580
    %v709 = vunpack.c.l.b16 %v581
    %v710 = vunpack.c.l.b16 %v582
    %v711 = vunpack.c.l.b16 %v583
    %v712 = vunpack.c.l.b16 %v584
    %v713 = vunpack.c.l.b16 %v585
    %v714 = vunpack.c.l.b16 %v586
    %v715 = vunpack.c.l.b16 %v587
    %v716 = vunpack.c.l.b16 %v588
    %v717 = vunpack.c.l.b16 %v589
    %v718 = vunpack.c.l.b16 %v590
    %v719 = vunpack.c.l.b16 %v591
    %v720 = vunpack.c.l.b16 %v592
    %v721 = vunpack.c.l.b16 %v593
    %v722 = vunpack.c.l.b16 %v594
    %v723 = vunpack.c.l.b16 %v595
    %v724 = vunpack.c.l.b16 %v596
    %v725 = vunpack.c.l.b16 %v597
    %v726 = vunpack.c.l.b16 %v598
    %v727 = vunpack.c.l.b16 %v599
    %v728 = vunpack.c.l.b16 %v600
    %v729 = vunpack.c.l.b16 %v601
    %v730 = vunpack.c.l.b16 %v602
    %v731 = vunpack.c.l.b16 %v603
    %v732 = vunpack.c.l.b16 %v604
    %v733 = vunpack.c.l.b16 %v605
    %v734 = vunpack.c.l.b16 %v606
    %v735 = vunpack.c.l.b16 %v607
    %v736 = vunpack.c.l.b16 %v608
    %v737 = vunpack.c.l.b16 %v609
    %v738 = vunpack.c.l.b16 %v610
    %v739 = vunpack.c.l.b16 %v611
    %v740 = vunpack.c.l.b16 %v612
    %v741 = vunpack.c.l.b16 %v613
    %v742 = vunpack.c.l.b16 %v614
    %v743 = vunpack.c.l.b16 %v615
    %v744 = vunpack.c.l.b16 %v616
    %v745 = vunpack.c.l.b16 %v617
    %v746 = vunpack.c.l.b16 %v618
    %v747 = vunpack.c.l.b16 %v619
    %v748 = vunpack.c.l.b16 %v620
    %v749 = vunpack.c.l.b16 %v621
    %v750 = vunpack.c.l.b16 %v622
    %v751 = vunpack.c.l.b16 %v623
    %v752 = vunpack.c.l.b16 %v624
    %v753 = vunpack.c.l.b16 %v625
    %v754 = vunpack.c.l.b16 %v626
    %v755 = vunpack.c.l.b16 %v627
    %v756 = vunpack.c.l.b16 %v628
    %v757 = vunpack.c.l.b16 %v629
    %v758 = vunpack.c.l.b16 %v630
    %v759 = vunpack.c.l.b16 %v631
    %v760 = vunpack.c.l.b16 %v632
    %v761 = vunpack.c.l.b16 %v633
    %v762 = vpack.c.b16 %v699, %v698
    %v763 = vpack.c.b16 %v701, %v700
    %v764 = vpack.c.b16 %v703, %v702
    %v765 = vpack.c.b16 %v705, %v704
    %v766 = vpack.c.b16 %v707, %v706
    %v767 = vpack.c.b16 %v709, %v708
    %v768 = vpack.c.b16 %v711, %v710
    %v769 = vpack.c.b16 %v713, %v712
    %v770 = vpack.c.b16 %v715, %v714
    %v771 = vpack.c.b16 %v717, %v716
    %v772 = vpack.c.b16 %v719, %v718
    %v773 = vpack.c.b16 %v721, %v720
    %v774 = vpack.c.b16 %v723, %v722
    %v775 = vpack.c.b16 %v725, %v724
    %v776 = vpack.c.b16 %v727, %v726
    %v777 = vpack.c.b16 %v729, %v728
    %v778 = vpack.c.b16 %v731, %v730
    %v779 = vpack.c.b16 %v733, %v732
    %v780 = vpack.c.b16 %v735, %v734
    %v781 = vpack.c.b16 %v737, %v736
    %v782 = vpack.c.b16 %v739, %v738
    %v783 = vpack.c.b16 %v741, %v740
    %v784 = vpack.c.b16 %v743, %v742
    %v785 = vpack.c.b16 %v745, %v744
    %v786 = vpack.c.b16 %v747, %v746
    %v787 = vpack.c.b16 %v749, %v748
    %v788 = vpack.c.b16 %v751, %v750
    %v789 = vpack.c.b16 %v753, %v752
    %v790 = vpack.c.b16 %v755, %v754
    %v791 = vpack.c.b16 %v757, %v756
    %v792 = vpack.c.b16 %v759, %v758
    %v793 = vpack.c.b16 %v761, %v760
    %826 = vmatprep.subr.bf16.mxu0 0
    %827 = vmatpush1.bf16.msra.mxu0 %v762
    %828 = vmatprep.subr.bf16.mxu0 0
    %829 = vmatpush1.bf16.msra.mxu0 %v763
    %830 = vmatprep.subr.bf16.mxu0 0
    %831 = vmatpush1.bf16.msra.mxu0 %v764
    %832 = vmatprep.subr.bf16.mxu0 0
    %833 = vmatpush1.bf16.msra.mxu0 %v765
    %834 = vmatprep.subr.bf16.mxu0 0
    %835 = vmatpush1.bf16.msra.mxu0 %v766
    %836 = vmatprep.subr.bf16.mxu0 0
    %837 = vmatpush1.bf16.msra.mxu0 %v767
    %838 = vmatprep.subr.bf16.mxu0 0
    %839 = vmatpush1.bf16.msra.mxu0 %v768
    %840 = vmatprep.subr.bf16.mxu0 0
    %841 = vmatpush1.bf16.msra.mxu0 %v769
    %842 = vmatprep.subr.bf16.mxu0 0
    %843 = vmatpush1.bf16.msra.mxu0 %v770
    %844 = vmatprep.subr.bf16.mxu0 0
    %845 = vmatpush1.bf16.msra.mxu0 %v771
    %846 = vmatprep.subr.bf16.mxu0 0
    %847 = vmatpush1.bf16.msra.mxu0 %v772
    %848 = vmatprep.subr.bf16.mxu0 0
    %849 = vmatpush1.bf16.msra.mxu0 %v773
    %850 = vmatprep.subr.bf16.mxu0 0
    %851 = vmatpush1.bf16.msra.mxu0 %v774
    %852 = vmatprep.subr.bf16.mxu0 0
    %853 = vmatpush1.bf16.msra.mxu0 %v775
    %854 = vmatprep.subr.bf16.mxu0 0
    %855 = vmatpush1.bf16.msra.mxu0 %v776
    %856 = vmatprep.subr.bf16.mxu0 0
    %857 = vmatpush1.bf16.msra.mxu0 %v777
    %858 = vmatprep.mubr.bf16.mxu0 %v567
    %859 = vmatmul.mubr.bf16.gmra.mrb[0].mxu0 %v566
    %v860 = vpop.f32.mrb[0].mxu0
    %v861 = vadd.f32 0.0, %v860
    %v862 = vpop.f32.mrb[0].mxu0
    %v863 = vpop.f32.mrb[0].mxu0
    %v864 = vpop.f32.mrb[0].mxu0
    %865 = vdwg.mxu0
    %866 = vmatprep.subr.bf16.mxu0 0
    %867 = vmatpush1.bf16.msra.mxu0 %v778
    %868 = vmatprep.subr.bf16.mxu0 0
    %869 = vmatpush1.bf16.msra.mxu0 %v779
    %870 = vmatprep.subr.bf16.mxu0 0
    %871 = vmatpush1.bf16.msra.mxu0 %v780
    %872 = vmatprep.subr.bf16.mxu0 0
    %873 = vmatpush1.bf16.msra.mxu0 %v781
    %874 = vmatprep.subr.bf16.mxu0 0
    %875 = vmatpush1.bf16.msra.mxu0 %v782
    %876 = vmatprep.subr.bf16.mxu0 0
    %877 = vmatpush1.bf16.msra.mxu0 %v783
    %878 = vmatprep.subr.bf16.mxu0 0
    %879 = vmatpush1.bf16.msra.mxu0 %v784
    %880 = vmatprep.subr.bf16.mxu0 0
    %881 = vmatpush1.bf16.msra.mxu0 %v785
    %882 = vmatprep.subr.bf16.mxu0 0
    %883 = vmatpush1.bf16.msra.mxu0 %v786
    %884 = vmatprep.subr.bf16.mxu0 0
    %885 = vmatpush1.bf16.msra.mxu0 %v787
    %886 = vmatprep.subr.bf16.mxu0 0
    %887 = vmatpush1.bf16.msra.mxu0 %v788
    %888 = vmatprep.subr.bf16.mxu0 0
    %889 = vmatpush1.bf16.msra.mxu0 %v789
    %890 = vmatprep.subr.bf16.mxu0 0
    %891 = vmatpush1.bf16.msra.mxu0 %v790
    %892 = vmatprep.subr.bf16.mxu0 0
    %893 = vmatpush1.bf16.msra.mxu0 %v791
    %894 = vmatprep.subr.bf16.mxu0 0
    %895 = vmatpush1.bf16.msra.mxu0 %v792
    %896 = vmatprep.subr.bf16.mxu0 0
    %897 = vmatpush1.bf16.msra.mxu0 %v793
    %898 = vmatprep.mubr.bf16.mxu0 %v569
    %899 = vmatmul.mubr.bf16.gmra.mrb[0].mxu0 %v568
    %v900 = vpop.f32.mrb[0].mxu0
    %v901 = vadd.f32 %v861, %v900
    %v902 = vpop.f32.mrb[0].mxu0
    %v903 = vpop.f32.mrb[0].mxu0
    %v904 = vpop.f32.mrb[0].mxu0
    %905 = vdwg.mxu0
    %v906 = vrot.slane %v901, 4
    %v907 = vadd.f32 %v901, %v906
    %v908 = vrot.slane %v907, 2
    %v909 = vadd.f32 %v907, %v908
    %v910 = vrot.slane %v909, 1
    %v911 = vadd.f32 %v909, %v910
    %913 = vrot.lane.b32.xlu0 %v911, 96
    %v914 = vpop.permute.xlu0 %913
    %v916 = vadd.f32 %v911, %v914
    %917 = vrot.lane.b32.xlu0 %v911, 64
    %v918 = vpop.permute.xlu0 %917
    %v920 = vadd.f32 %v916, %v918
    %921 = vrot.lane.b32.xlu0 %v911, 32
    %v922 = vpop.permute.xlu0 %921
    %v924 = vadd.f32 %v920, %v922
    %v925 = vmul.f32 %v924, 0.03125
    %927 = vrot.lane.b32.xlu0 %v925, 32
    %v928 = vpop.permute.xlu0 %927
    %930 = vrot.lane.b32.xlu0 %v925, 64
    %v931 = vpop.permute.xlu0 %930
    %933 = vrot.lane.b32.xlu0 %v925, 96
    %v934 = vpop.permute.xlu0 %933
    %v936 = vsel %vm429, %v925, %v928
    %v937 = vsel %vm192, %v936, %v931
    %v938 = vsel %vm436, %v937, %v934
    %v939 = vlaneseq
    %v940 = vshrl.u32 %v939, 7
    %v941 = vsub.s32 0, %v940
    %v942 = vrot.slane %v938, %v941
    %v943 = vsub.f32 %v901, %v942
    %v944 = vmul.f32 %v943, %v943
    %v945 = vrot.slane %v944, 4
    %v946 = vadd.f32 %v944, %v945
    %v947 = vrot.slane %v946, 2
    %v948 = vadd.f32 %v946, %v947
    %v949 = vrot.slane %v948, 1
    %v950 = vadd.f32 %v948, %v949
    %952 = vrot.lane.b32.xlu0 %v950, 96
    %v953 = vpop.permute.xlu0 %952
    %v955 = vadd.f32 %v950, %v953
    %956 = vrot.lane.b32.xlu0 %v950, 64
    %v957 = vpop.permute.xlu0 %956
    %v959 = vadd.f32 %v955, %v957
    %960 = vrot.lane.b32.xlu0 %v950, 32
    %v961 = vpop.permute.xlu0 %960
    %v963 = vadd.f32 %v959, %v961
    %v964 = vmul.f32 %v963, 0.03125
    %v965 = vld [vmem:[%s9] sm:$0x1]
    %v966 = vadd.f32 %v964, 1e-05
    %v967 = vrsqrt.pop %v966
    %v968 = vmul.f32 %v965, %v967
    %v970 = vlaneseq
    %v971 = vshrl.u32 %v970, 7
    %v972 = vsub.s32 0, %v971
    %v973 = vrot.slane %v968, %v972
    %974 = vrot.lane.b32.xlu0 %v973, 32
    %v975 = vpop.permute.xlu0 %974
    %977 = vrot.lane.b32.xlu0 %v973, 64
    %v978 = vpop.permute.xlu0 %977
    %980 = vrot.lane.b32.xlu0 %v973, 96
    %v981 = vpop.permute.xlu0 %980
    %v983 = vsel %vm429, %v968, %v975
    %v984 = vsel %vm192, %v983, %v978
    %v985 = vsel %vm436, %v984, %v981
    %v986 = vlaneseq
    %v987 = vshrl.u32 %v986, 7
    %v988 = vsub.s32 0, %v987
    %v989 = vrot.slane %v985, %v988
    %v990 = vmul.f32 %v943, %v989
    %v991 = vld [vmem:[%s10] sm:$0x1]
    %v993 = vlaneseq
    %v994 = vshrl.u32 %v993, 7
    %v995 = vsub.s32 0, %v994
    %v996 = vrot.slane %v991, %v995
    %v998 = vadd.f32 %v990, %v996
    %v999 = vmax.f32 %v998, 0.0
    %1000 = vst [vmem:[#allocation3] sm:$0xff] %v999
    %v1001 = vld [vmem:[#allocation3] ss:$2 sm:$0xf]
    %s1002 = scalar_lea.vmem [#allocation3], 1
    %v1003 = vld [vmem:[%s1002] ss:$2 sm:$0xf]
    %v1004 = vld [vmem:[%s1002] ss:$2 sm:$0x7]
    %v1006 = vrot.slane %v1004, 7
    %v1008 = vsel %vm135, 0.0, %v1006
    %s1009 = scalar_lea.vmem [#allocation3], 2
    %v1010 = vld [vmem:[%s1009] ss:$2 sm:$0x7]
    %vm1011 = vcmask 1042432
    %v1012 = vsel %vm1011, %v1010, 0.0
    %v1013 = vld [vmem:[%s12] sm:$0xf]
    %1015 = vset.pattern.permute.xlu0 0
    %1016 = vperm.xlu0 %1015, %v1013
    %v1017 = vpop.permute.xlu0 %1016
    %v1019 = vmul.f32 %v1008, %v1017
    %v1020 = vld [vmem:[%s13] sm:$0xf]
    %1022 = vset.pattern.permute.xlu0 0
    %1023 = vperm.xlu0 %1022, %v1020
    %v1024 = vpop.permute.xlu0 %1023
    %v1026 = vmul.f32 %v1012, %v1024
    %v1027 = vpack.c.bf16 %v1019, %v1019
    %v1028 = vpack.c.bf16 %v1001, %v1001
    %v1029 = vpack.c.bf16 %v1003, %v1003
    %v1030 = vpack.c.bf16 %v1026, %v1026
    %v1031 = vld [vmem:[#allocation10] sm:$0xf]
    %v1032 = vld [vmem:[#allocation10 + $0x4] sm:$0xf]
    %v1033 = vld [vmem:[#allocation10 + $0x8] sm:$0xf]
    %v1034 = vld [vmem:[#allocation10 + $0xc] sm:$0xf]
    %v1035 = vld [vmem:[#allocation10 + $0x10] sm:$0xf]
    %v1036 = vld [vmem:[#allocation10 + $0x14] sm:$0xf]
    %v1037 = vld [vmem:[#allocation10 + $0x18] sm:$0xf]
    %v1038 = vld [vmem:[#allocation10 + $0x1c] sm:$0xf]
    %v1039 = vld [vmem:[#allocation10 + $0x20] sm:$0xf]
    %v1040 = vld [vmem:[#allocation10 + $0x24] sm:$0xf]
    %v1041 = vld [vmem:[#allocation10 + $0x28] sm:$0xf]
    %v1042 = vld [vmem:[#allocation10 + $0x2c] sm:$0xf]
    %v1043 = vld [vmem:[#allocation10 + $0x30] sm:$0xf]
    %v1044 = vld [vmem:[#allocation10 + $0x34] sm:$0xf]
    %v1045 = vld [vmem:[#allocation10 + $0x38] sm:$0xf]
    %v1046 = vld [vmem:[#allocation10 + $0x3c] sm:$0xf]
    %v1047 = vld [vmem:[#allocation10 + $0x40] sm:$0xf]
    %v1048 = vld [vmem:[#allocation10 + $0x44] sm:$0xf]
    %v1049 = vld [vmem:[#allocation10 + $0x48] sm:$0xf]
    %v1050 = vld [vmem:[#allocation10 + $0x4c] sm:$0xf]
    %v1051 = vld [vmem:[#allocation10 + $0x50] sm:$0xf]
    %v1052 = vld [vmem:[#allocation10 + $0x54] sm:$0xf]
    %v1053 = vld [vmem:[#allocation10 + $0x58] sm:$0xf]
    %v1054 = vld [vmem:[#allocation10 + $0x5c] sm:$0xf]
    %v1055 = vld [vmem:[#allocation10 + $0x60] sm:$0xf]
    %v1056 = vld [vmem:[#allocation10 + $0x64] sm:$0xf]
    %v1057 = vld [vmem:[#allocation10 + $0x68] sm:$0xf]
    %v1058 = vld [vmem:[#allocation10 + $0x6c] sm:$0xf]
    %v1059 = vld [vmem:[#allocation10 + $0x70] sm:$0xf]
    %v1060 = vld [vmem:[#allocation10 + $0x74] sm:$0xf]
    %v1061 = vld [vmem:[#allocation10 + $0x78] sm:$0xf]
    %v1062 = vld [vmem:[#allocation10 + $0x7c] sm:$0xf]
    %v1063 = vld [vmem:[#allocation10 + $0x80] sm:$0xf]
    %v1064 = vld [vmem:[#allocation10 + $0x84] sm:$0xf]
    %v1065 = vld [vmem:[#allocation10 + $0x88] sm:$0xf]
    %v1066 = vld [vmem:[#allocation10 + $0x8c] sm:$0xf]
    %v1067 = vld [vmem:[#allocation10 + $0x90] sm:$0xf]
    %v1068 = vld [vmem:[#allocation10 + $0x94] sm:$0xf]
    %v1069 = vld [vmem:[#allocation10 + $0x98] sm:$0xf]
    %v1070 = vld [vmem:[#allocation10 + $0x9c] sm:$0xf]
    %v1071 = vld [vmem:[#allocation10 + $0xa0] sm:$0xf]
    %v1072 = vld [vmem:[#allocation10 + $0xa4] sm:$0xf]
    %v1073 = vld [vmem:[#allocation10 + $0xa8] sm:$0xf]
    %v1074 = vld [vmem:[#allocation10 + $0xac] sm:$0xf]
    %v1075 = vld [vmem:[#allocation10 + $0xb0] sm:$0xf]
    %v1076 = vld [vmem:[#allocation10 + $0xb4] sm:$0xf]
    %v1077 = vld [vmem:[#allocation10 + $0xb8] sm:$0xf]
    %v1078 = vld [vmem:[#allocation10 + $0xbc] sm:$0xf]
    %v1079 = vld [vmem:[#allocation10 + $0xc0] sm:$0xf]
    %v1080 = vld [vmem:[#allocation10 + $0xc4] sm:$0xf]
    %v1081 = vld [vmem:[#allocation10 + $0xc8] sm:$0xf]
    %v1082 = vld [vmem:[#allocation10 + $0xcc] sm:$0xf]
    %v1083 = vld [vmem:[#allocation10 + $0xd0] sm:$0xf]
    %v1084 = vld [vmem:[#allocation10 + $0xd4] sm:$0xf]
    %v1085 = vld [vmem:[#allocation10 + $0xd8] sm:$0xf]
    %v1086 = vld [vmem:[#allocation10 + $0xdc] sm:$0xf]
    %v1087 = vld [vmem:[#allocation10 + $0xe0] sm:$0xf]
    %v1088 = vld [vmem:[#allocation10 + $0xe4] sm:$0xf]
    %v1089 = vld [vmem:[#allocation10 + $0xe8] sm:$0xf]
    %v1090 = vld [vmem:[#allocation10 + $0xec] sm:$0xf]
    %v1091 = vld [vmem:[#allocation10 + $0xf0] sm:$0xf]
    %v1092 = vld [vmem:[#allocation10 + $0xf4] sm:$0xf]
    %v1093 = vld [vmem:[#allocation10 + $0xf8] sm:$0xf]
    %v1094 = vld [vmem:[#allocation10 + $0xfc] sm:$0xf]
    %v1159 = vunpack.c.l.b16 %v1031
    %v1160 = vunpack.c.l.b16 %v1032
    %v1161 = vunpack.c.l.b16 %v1033
    %v1162 = vunpack.c.l.b16 %v1034
    %v1163 = vunpack.c.l.b16 %v1035
    %v1164 = vunpack.c.l.b16 %v1036
    %v1165 = vunpack.c.l.b16 %v1037
    %v1166 = vunpack.c.l.b16 %v1038
    %v1167 = vunpack.c.l.b16 %v1039
    %v1168 = vunpack.c.l.b16 %v1040
    %v1169 = vunpack.c.l.b16 %v1041
    %v1170 = vunpack.c.l.b16 %v1042
    %v1171 = vunpack.c.l.b16 %v1043
    %v1172 = vunpack.c.l.b16 %v1044
    %v1173 = vunpack.c.l.b16 %v1045
    %v1174 = vunpack.c.l.b16 %v1046
    %v1175 = vunpack.c.l.b16 %v1047
    %v1176 = vunpack.c.l.b16 %v1048
    %v1177 = vunpack.c.l.b16 %v1049
    %v1178 = vunpack.c.l.b16 %v1050
    %v1179 = vunpack.c.l.b16 %v1051
    %v1180 = vunpack.c.l.b16 %v1052
    %v1181 = vunpack.c.l.b16 %v1053
    %v1182 = vunpack.c.l.b16 %v1054
    %v1183 = vunpack.c.l.b16 %v1055
    %v1184 = vunpack.c.l.b16 %v1056
    %v1185 = vunpack.c.l.b16 %v1057
    %v1186 = vunpack.c.l.b16 %v1058
    %v1187 = vunpack.c.l.b16 %v1059
    %v1188 = vunpack.c.l.b16 %v1060
    %v1189 = vunpack.c.l.b16 %v1061
    %v1190 = vunpack.c.l.b16 %v1062
    %v1191 = vunpack.c.l.b16 %v1063
    %v1192 = vunpack.c.l.b16 %v1064
    %v1193 = vunpack.c.l.b16 %v1065
    %v1194 = vunpack.c.l.b16 %v1066
    %v1195 = vunpack.c.l.b16 %v1067
    %v1196 = vunpack.c.l.b16 %v1068
    %v1197 = vunpack.c.l.b16 %v1069
    %v1198 = vunpack.c.l.b16 %v1070
    %v1199 = vunpack.c.l.b16 %v1071
    %v1200 = vunpack.c.l.b16 %v1072
    %v1201 = vunpack.c.l.b16 %v1073
    %v1202 = vunpack.c.l.b16 %v1074
    %v1203 = vunpack.c.l.b16 %v1075
    %v1204 = vunpack.c.l.b16 %v1076
    %v1205 = vunpack.c.l.b16 %v1077
    %v1206 = vunpack.c.l.b16 %v1078
    %v1207 = vunpack.c.l.b16 %v1079
    %v1208 = vunpack.c.l.b16 %v1080
    %v1209 = vunpack.c.l.b16 %v1081
    %v1210 = vunpack.c.l.b16 %v1082
    %v1211 = vunpack.c.l.b16 %v1083
    %v1212 = vunpack.c.l.b16 %v1084
    %v1213 = vunpack.c.l.b16 %v1085
    %v1214 = vunpack.c.l.b16 %v1086
    %v1215 = vunpack.c.l.b16 %v1087
    %v1216 = vunpack.c.l.b16 %v1088
    %v1217 = vunpack.c.l.b16 %v1089
    %v1218 = vunpack.c.l.b16 %v1090
    %v1219 = vunpack.c.l.b16 %v1091
    %v1220 = vunpack.c.l.b16 %v1092
    %v1221 = vunpack.c.l.b16 %v1093
    %v1222 = vunpack.c.l.b16 %v1094
    %v1223 = vpack.c.b16 %v1160, %v1159
    %v1224 = vpack.c.b16 %v1162, %v1161
    %v1225 = vpack.c.b16 %v1164, %v1163
    %v1226 = vpack.c.b16 %v1166, %v1165
    %v1227 = vpack.c.b16 %v1168, %v1167
    %v1228 = vpack.c.b16 %v1170, %v1169
    %v1229 = vpack.c.b16 %v1172, %v1171
    %v1230 = vpack.c.b16 %v1174, %v1173
    %v1231 = vpack.c.b16 %v1176, %v1175
    %v1232 = vpack.c.b16 %v1178, %v1177
    %v1233 = vpack.c.b16 %v1180, %v1179
    %v1234 = vpack.c.b16 %v1182, %v1181
    %v1235 = vpack.c.b16 %v1184, %v1183
    %v1236 = vpack.c.b16 %v1186, %v1185
    %v1237 = vpack.c.b16 %v1188, %v1187
    %v1238 = vpack.c.b16 %v1190, %v1189
    %v1239 = vpack.c.b16 %v1192, %v1191
    %v1240 = vpack.c.b16 %v1194, %v1193
    %v1241 = vpack.c.b16 %v1196, %v1195
    %v1242 = vpack.c.b16 %v1198, %v1197
    %v1243 = vpack.c.b16 %v1200, %v1199
    %v1244 = vpack.c.b16 %v1202, %v1201
    %v1245 = vpack.c.b16 %v1204, %v1203
    %v1246 = vpack.c.b16 %v1206, %v1205
    %v1247 = vpack.c.b16 %v1208, %v1207
    %v1248 = vpack.c.b16 %v1210, %v1209
    %v1249 = vpack.c.b16 %v1212, %v1211
    %v1250 = vpack.c.b16 %v1214, %v1213
    %v1251 = vpack.c.b16 %v1216, %v1215
    %v1252 = vpack.c.b16 %v1218, %v1217
    %v1253 = vpack.c.b16 %v1220, %v1219
    %v1254 = vpack.c.b16 %v1222, %v1221
    %1287 = vmatprep.subr.bf16.mxu0 0
    %1288 = vmatpush1.bf16.msra.mxu0 %v1223
    %1289 = vmatprep.subr.bf16.mxu0 0
    %1290 = vmatpush1.bf16.msra.mxu0 %v1224
    %1291 = vmatprep.subr.bf16.mxu0 0
    %1292 = vmatpush1.bf16.msra.mxu0 %v1225
    %1293 = vmatprep.subr.bf16.mxu0 0
    %1294 = vmatpush1.bf16.msra.mxu0 %v1226
    %1295 = vmatprep.subr.bf16.mxu0 0
    %1296 = vmatpush1.bf16.msra.mxu0 %v1227
    %1297 = vmatprep.subr.bf16.mxu0 0
    %1298 = vmatpush1.bf16.msra.mxu0 %v1228
    %1299 = vmatprep.subr.bf16.mxu0 0
    %1300 = vmatpush1.bf16.msra.mxu0 %v1229
    %1301 = vmatprep.subr.bf16.mxu0 0
    %1302 = vmatpush1.bf16.msra.mxu0 %v1230
    %1303 = vmatprep.subr.bf16.mxu0 0
    %1304 = vmatpush1.bf16.msra.mxu0 %v1231
    %1305 = vmatprep.subr.bf16.mxu0 0
    %1306 = vmatpush1.bf16.msra.mxu0 %v1232
    %1307 = vmatprep.subr.bf16.mxu0 0
    %1308 = vmatpush1.bf16.msra.mxu0 %v1233
    %1309 = vmatprep.subr.bf16.mxu0 0
    %1310 = vmatpush1.bf16.msra.mxu0 %v1234
    %1311 = vmatprep.subr.bf16.mxu0 0
    %1312 = vmatpush1.bf16.msra.mxu0 %v1235
    %1313 = vmatprep.subr.bf16.mxu0 0
    %1314 = vmatpush1.bf16.msra.mxu0 %v1236
    %1315 = vmatprep.subr.bf16.mxu0 0
    %1316 = vmatpush1.bf16.msra.mxu0 %v1237
    %1317 = vmatprep.subr.bf16.mxu0 0
    %1318 = vmatpush1.bf16.msra.mxu0 %v1238
    %1319 = vmatprep.mubr.bf16.mxu0 %v1028
    %1320 = vmatmul.mubr.bf16.gmra.mrb[0].mxu0 %v1027
    %v1321 = vpop.f32.mrb[0].mxu0
    %v1322 = vadd.f32 0.0, %v1321
    %v1323 = vpop.f32.mrb[0].mxu0
    %v1324 = vpop.f32.mrb[0].mxu0
    %v1325 = vpop.f32.mrb[0].mxu0
    %1326 = vdwg.mxu0
    %1327 = vmatprep.subr.bf16.mxu0 0
    %1328 = vmatpush1.bf16.msra.mxu0 %v1239
    %1329 = vmatprep.subr.bf16.mxu0 0
    %1330 = vmatpush1.bf16.msra.mxu0 %v1240
    %1331 = vmatprep.subr.bf16.mxu0 0
    %1332 = vmatpush1.bf16.msra.mxu0 %v1241
    %1333 = vmatprep.subr.bf16.mxu0 0
    %1334 = vmatpush1.bf16.msra.mxu0 %v1242
    %1335 = vmatprep.subr.bf16.mxu0 0
    %1336 = vmatpush1.bf16.msra.mxu0 %v1243
    %1337 = vmatprep.subr.bf16.mxu0 0
    %1338 = vmatpush1.bf16.msra.mxu0 %v1244
    %1339 = vmatprep.subr.bf16.mxu0 0
    %1340 = vmatpush1.bf16.msra.mxu0 %v1245
    %1341 = vmatprep.subr.bf16.mxu0 0
    %1342 = vmatpush1.bf16.msra.mxu0 %v1246
    %1343 = vmatprep.subr.bf16.mxu0 0
    %1344 = vmatpush1.bf16.msra.mxu0 %v1247
    %1345 = vmatprep.subr.bf16.mxu0 0
    %1346 = vmatpush1.bf16.msra.mxu0 %v1248
    %1347 = vmatprep.subr.bf16.mxu0 0
    %1348 = vmatpush1.bf16.msra.mxu0 %v1249
    %1349 = vmatprep.subr.bf16.mxu0 0
    %1350 = vmatpush1.bf16.msra.mxu0 %v1250
    %1351 = vmatprep.subr.bf16.mxu0 0
    %1352 = vmatpush1.bf16.msra.mxu0 %v1251
    %1353 = vmatprep.subr.bf16.mxu0 0
    %1354 = vmatpush1.bf16.msra.mxu0 %v1252
    %1355 = vmatprep.subr.bf16.mxu0 0
    %1356 = vmatpush1.bf16.msra.mxu0 %v1253
    %1357 = vmatprep.subr.bf16.mxu0 0
    %1358 = vmatpush1.bf16.msra.mxu0 %v1254
    %1359 = vmatprep.mubr.bf16.mxu0 %v1030
    %1360 = vmatmul.mubr.bf16.gmra.mrb[0].mxu0 %v1029
    %v1361 = vpop.f32.mrb[0].mxu0
    %v1362 = vadd.f32 %v1322, %v1361
    %v1363 = vpop.f32.mrb[0].mxu0
    %v1364 = vpop.f32.mrb[0].mxu0
    %v1365 = vpop.f32.mrb[0].mxu0
    %1366 = vdwg.mxu0
    %vm1367 = vcmask 1043456
    %v1368 = vsel %vm1367, %v1362, 0.0
    %v1369 = vrot.slane %v1368, 4
    %v1370 = vadd.f32 %v1368, %v1369
    %v1371 = vrot.slane %v1370, 2
    %v1372 = vadd.f32 %v1370, %v1371
    %v1373 = vrot.slane %v1372, 1
    %v1374 = vadd.f32 %v1372, %v1373
    %1376 = vrot.lane.b32.xlu0 %v1374, 64
    %v1377 = vpop.permute.xlu0 %1376
    %v1379 = vadd.f32 %v1374, %v1377
    %v1380 = vmul.f32 %v1379, 0.125
    %1382 = vrot.lane.b32.xlu0 %v1380, 64
    %v1383 = vpop.permute.xlu0 %1382
    %v1385 = vsel %vm192, %v1380, %v1383
    %v1386 = vlaneseq
    %v1387 = vshrl.u32 %v1386, 7
    %v1388 = vsub.s32 0, %v1387
    %v1389 = vrot.slane %v1385, %v1388
    %v1390 = vsub.f32 %v1362, %v1389
    %v1391 = vmul.f32 %v1390, %v1390
    %v1392 = vsel %vm1367, %v1391, 0.0
    %v1393 = vrot.slane %v1392, 4
    %v1394 = vadd.f32 %v1392, %v1393
    %v1395 = vrot.slane %v1394, 2
    %v1396 = vadd.f32 %v1394, %v1395
    %v1397 = vrot.slane %v1396, 1
    %v1398 = vadd.f32 %v1396, %v1397
    %1400 = vrot.lane.b32.xlu0 %v1398, 64
    %v1401 = vpop.permute.xlu0 %1400
    %v1403 = vadd.f32 %v1398, %v1401
    %v1404 = vmul.f32 %v1403, 0.125
    %v1405 = vld [vmem:[%s14] sm:$0x1]
    %v1406 = vadd.f32 %v1404, 1e-05
    %v1407 = vrsqrt.pop %v1406
    %v1408 = vmul.f32 %v1405, %v1407
    %v1410 = vlaneseq
    %v1411 = vshrl.u32 %v1410, 7
    %v1412 = vsub.s32 0, %v1411
    %v1413 = vrot.slane %v1408, %v1412
    %1414 = vrot.lane.b32.xlu0 %v1413, 64
    %v1415 = vpop.permute.xlu0 %1414
    %v1417 = vsel %vm192, %v1408, %v1415
    %v1418 = vlaneseq
    %v1419 = vshrl.u32 %v1418, 7
    %v1420 = vsub.s32 0, %v1419
    %v1421 = vrot.slane %v1417, %v1420
    %v1422 = vmul.f32 %v1390, %v1421
    %v1423 = vld [vmem:[%s15] sm:$0x1]
    %v1425 = vlaneseq
    %v1426 = vshrl.u32 %v1425, 7
    %v1427 = vsub.s32 0, %v1426
    %v1428 = vrot.slane %v1423, %v1427
    %v1430 = vadd.f32 %v1422, %v1428
    %v1431 = vmax.f32 %v1430, 0.0
    %1432 = vst [vmem:[#allocation4] sm:$0xf] %v1431
    %v1433 = vld [vmem:[#allocation4] ss:$2 sm:$0x3]
    %s1434 = scalar_lea.vmem [#allocation4], 1
    %v1435 = vld [vmem:[%s1434] ss:$2 sm:$0x3]
    %v1436 = vld [vmem:[%s1434] ss:$2 sm:$0x1]
    %v1438 = vrot.slane %v1436, 7
    %v1440 = vsel %vm135, 0.0, %v1438
    %s1441 = scalar_lea.vmem [#allocation4], 2
    %v1442 = vld [vmem:[%s1441] ss:$2 sm:$0x1]
    %v1443 = vsel %vm135, %v1442, 0.0
    %v1444 = vld [vmem:[%s17] sm:$0x3]
    %1446 = vset.pattern.permute.xlu0 0
    %1447 = vperm.xlu0 %1446, %v1444
    %v1448 = vpop.permute.xlu0 %1447
    %v1450 = vmul.f32 %v1440, %v1448
    %v1451 = vld [vmem:[%s18] sm:$0x3]
    %1453 = vset.pattern.permute.xlu0 0
    %1454 = vperm.xlu0 %1453, %v1451
    %v1455 = vpop.permute.xlu0 %1454
    %v1457 = vmul.f32 %v1443, %v1455
    %v1458 = vpack.c.bf16 %v1450, %v1450
    %v1459 = vpack.c.bf16 %v1433, %v1433
    %v1460 = vpack.c.bf16 %v1435, %v1435
    %v1461 = vpack.c.bf16 %v1457, %v1457
    %v1462 = vld [vmem:[#allocation11] sm:$0xf]
    %v1463 = vld [vmem:[#allocation11 + $0x4] sm:$0xf]
    %v1464 = vld [vmem:[#allocation11 + $0x8] sm:$0xf]
    %v1465 = vld [vmem:[#allocation11 + $0xc] sm:$0xf]
    %v1466 = vld [vmem:[#allocation11 + $0x10] sm:$0xf]
    %v1467 = vld [vmem:[#allocation11 + $0x14] sm:$0xf]
    %v1468 = vld [vmem:[#allocation11 + $0x18] sm:$0xf]
    %v1469 = vld [vmem:[#allocation11 + $0x1c] sm:$0xf]
    %v1470 = vld [vmem:[#allocation11 + $0x20] sm:$0xf]
    %v1471 = vld [vmem:[#allocation11 + $0x24] sm:$0xf]
    %v1472 = vld [vmem:[#allocation11 + $0x28] sm:$0xf]
    %v1473 = vld [vmem:[#allocation11 + $0x2c] sm:$0xf]
    %v1474 = vld [vmem:[#allocation11 + $0x30] sm:$0xf]
    %v1475 = vld [vmem:[#allocation11 + $0x34] sm:$0xf]
    %v1476 = vld [vmem:[#allocation11 + $0x38] sm:$0xf]
    %v1477 = vld [vmem:[#allocation11 + $0x3c] sm:$0xf]
    %v1478 = vld [vmem:[#allocation11 + $0x40] sm:$0xf]
    %v1479 = vld [vmem:[#allocation11 + $0x44] sm:$0xf]
    %v1480 = vld [vmem:[#allocation11 + $0x48] sm:$0xf]
    %v1481 = vld [vmem:[#allocation11 + $0x4c] sm:$0xf]
    %v1482 = vld [vmem:[#allocation11 + $0x50] sm:$0xf]
    %v1483 = vld [vmem:[#allocation11 + $0x54] sm:$0xf]
    %v1484 = vld [vmem:[#allocation11 + $0x58] sm:$0xf]
    %v1485 = vld [vmem:[#allocation11 + $0x5c] sm:$0xf]
    %v1486 = vld [vmem:[#allocation11 + $0x60] sm:$0xf]
    %v1487 = vld [vmem:[#allocation11 + $0x64] sm:$0xf]
    %v1488 = vld [vmem:[#allocation11 + $0x68] sm:$0xf]
    %v1489 = vld [vmem:[#allocation11 + $0x6c] sm:$0xf]
    %v1490 = vld [vmem:[#allocation11 + $0x70] sm:$0xf]
    %v1491 = vld [vmem:[#allocation11 + $0x74] sm:$0xf]
    %v1492 = vld [vmem:[#allocation11 + $0x78] sm:$0xf]
    %v1493 = vld [vmem:[#allocation11 + $0x7c] sm:$0xf]
    %v1494 = vld [vmem:[#allocation11 + $0x80] sm:$0xf]
    %v1495 = vld [vmem:[#allocation11 + $0x84] sm:$0xf]
    %v1496 = vld [vmem:[#allocation11 + $0x88] sm:$0xf]
    %v1497 = vld [vmem:[#allocation11 + $0x8c] sm:$0xf]
    %v1498 = vld [vmem:[#allocation11 + $0x90] sm:$0xf]
    %v1499 = vld [vmem:[#allocation11 + $0x94] sm:$0xf]
    %v1500 = vld [vmem:[#allocation11 + $0x98] sm:$0xf]
    %v1501 = vld [vmem:[#allocation11 + $0x9c] sm:$0xf]
    %v1502 = vld [vmem:[#allocation11 + $0xa0] sm:$0xf]
    %v1503 = vld [vmem:[#allocation11 + $0xa4] sm:$0xf]
    %v1504 = vld [vmem:[#allocation11 + $0xa8] sm:$0xf]
    %v1505 = vld [vmem:[#allocation11 + $0xac] sm:$0xf]
    %v1506 = vld [vmem:[#allocation11 + $0xb0] sm:$0xf]
    %v1507 = vld [vmem:[#allocation11 + $0xb4] sm:$0xf]
    %v1508 = vld [vmem:[#allocation11 + $0xb8] sm:$0xf]
    %v1509 = vld [vmem:[#allocation11 + $0xbc] sm:$0xf]
    %v1510 = vld [vmem:[#allocation11 + $0xc0] sm:$0xf]
    %v1511 = vld [vmem:[#allocation11 + $0xc4] sm:$0xf]
    %v1512 = vld [vmem:[#allocation11 + $0xc8] sm:$0xf]
    %v1513 = vld [vmem:[#allocation11 + $0xcc] sm:$0xf]
    %v1514 = vld [vmem:[#allocation11 + $0xd0] sm:$0xf]
    %v1515 = vld [vmem:[#allocation11 + $0xd4] sm:$0xf]
    %v1516 = vld [vmem:[#allocation11 + $0xd8] sm:$0xf]
    %v1517 = vld [vmem:[#allocation11 + $0xdc] sm:$0xf]
    %v1518 = vld [vmem:[#allocation11 + $0xe0] sm:$0xf]
    %v1519 = vld [vmem:[#allocation11 + $0xe4] sm:$0xf]
    %v1520 = vld [vmem:[#allocation11 + $0xe8] sm:$0xf]
    %v1521 = vld [vmem:[#allocation11 + $0xec] sm:$0xf]
    %v1522 = vld [vmem:[#allocation11 + $0xf0] sm:$0xf]
    %v1523 = vld [vmem:[#allocation11 + $0xf4] sm:$0xf]
    %v1524 = vld [vmem:[#allocation11 + $0xf8] sm:$0xf]
    %v1525 = vld [vmem:[#allocation11 + $0xfc] sm:$0xf]
    %v1590 = vunpack.c.l.b16 %v1462
    %v1591 = vunpack.c.l.b16 %v1463
    %v1592 = vunpack.c.l.b16 %v1464
    %v1593 = vunpack.c.l.b16 %v1465
    %v1594 = vunpack.c.l.b16 %v1466
    %v1595 = vunpack.c.l.b16 %v1467
    %v1596 = vunpack.c.l.b16 %v1468
    %v1597 = vunpack.c.l.b16 %v1469
    %v1598 = vunpack.c.l.b16 %v1470
    %v1599 = vunpack.c.l.b16 %v1471
    %v1600 = vunpack.c.l.b16 %v1472
    %v1601 = vunpack.c.l.b16 %v1473
    %v1602 = vunpack.c.l.b16 %v1474
    %v1603 = vunpack.c.l.b16 %v1475
    %v1604 = vunpack.c.l.b16 %v1476
    %v1605 = vunpack.c.l.b16 %v1477
    %v1606 = vunpack.c.l.b16 %v1478
    %v1607 = vunpack.c.l.b16 %v1479
    %v1608 = vunpack.c.l.b16 %v1480
    %v1609 = vunpack.c.l.b16 %v1481
    %v1610 = vunpack.c.l.b16 %v1482
    %v1611 = vunpack.c.l.b16 %v1483
    %v1612 = vunpack.c.l.b16 %v1484
    %v1613 = vunpack.c.l.b16 %v1485
    %v1614 = vunpack.c.l.b16 %v1486
    %v1615 = vunpack.c.l.b16 %v1487
    %v1616 = vunpack.c.l.b16 %v1488
    %v1617 = vunpack.c.l.b16 %v1489
    %v1618 = vunpack.c.l.b16 %v1490
    %v1619 = vunpack.c.l.b16 %v1491
    %v1620 = vunpack.c.l.b16 %v1492
    %v1621 = vunpack.c.l.b16 %v1493
    %v1622 = vunpack.c.l.b16 %v1494
    %v1623 = vunpack.c.l.b16 %v1495
    %v1624 = vunpack.c.l.b16 %v1496
    %v1625 = vunpack.c.l.b16 %v1497
    %v1626 = vunpack.c.l.b16 %v1498
    %v1627 = vunpack.c.l.b16 %v1499
    %v1628 = vunpack.c.l.b16 %v1500
    %v1629 = vunpack.c.l.b16 %v1501
    %v1630 = vunpack.c.l.b16 %v1502
    %v1631 = vunpack.c.l.b16 %v1503
    %v1632 = vunpack.c.l.b16 %v1504
    %v1633 = vunpack.c.l.b16 %v1505
    %v1634 = vunpack.c.l.b16 %v1506
    %v1635 = vunpack.c.l.b16 %v1507
    %v1636 = vunpack.c.l.b16 %v1508
    %v1637 = vunpack.c.l.b16 %v1509
    %v1638 = vunpack.c.l.b16 %v1510
    %v1639 = vunpack.c.l.b16 %v1511
    %v1640 = vunpack.c.l.b16 %v1512
    %v1641 = vunpack.c.l.b16 %v1513
    %v1642 = vunpack.c.l.b16 %v1514
    %v1643 = vunpack.c.l.b16 %v1515
    %v1644 = vunpack.c.l.b16 %v1516
    %v1645 = vunpack.c.l.b16 %v1517
    %v1646 = vunpack.c.l.b16 %v1518
    %v1647 = vunpack.c.l.b16 %v1519
    %v1648 = vunpack.c.l.b16 %v1520
    %v1649 = vunpack.c.l.b16 %v1521
    %v1650 = vunpack.c.l.b16 %v1522
    %v1651 = vunpack.c.l.b16 %v1523
    %v1652 = vunpack.c.l.b16 %v1524
    %v1653 = vunpack.c.l.b16 %v1525
    %v1654 = vpack.c.b16 %v1591, %v1590
    %v1655 = vpack.c.b16 %v1593, %v1592
    %v1656 = vpack.c.b16 %v1595, %v1594
    %v1657 = vpack.c.b16 %v1597, %v1596
    %v1658 = vpack.c.b16 %v1599, %v1598
    %v1659 = vpack.c.b16 %v1601, %v1600
    %v1660 = vpack.c.b16 %v1603, %v1602
    %v1661 = vpack.c.b16 %v1605, %v1604
    %v1662 = vpack.c.b16 %v1607, %v1606
    %v1663 = vpack.c.b16 %v1609, %v1608
    %v1664 = vpack.c.b16 %v1611, %v1610
    %v1665 = vpack.c.b16 %v1613, %v1612
    %v1666 = vpack.c.b16 %v1615, %v1614
    %v1667 = vpack.c.b16 %v1617, %v1616
    %v1668 = vpack.c.b16 %v1619, %v1618
    %v1669 = vpack.c.b16 %v1621, %v1620
    %v1670 = vpack.c.b16 %v1623, %v1622
    %v1671 = vpack.c.b16 %v1625, %v1624
    %v1672 = vpack.c.b16 %v1627, %v1626
    %v1673 = vpack.c.b16 %v1629, %v1628
    %v1674 = vpack.c.b16 %v1631, %v1630
    %v1675 = vpack.c.b16 %v1633, %v1632
    %v1676 = vpack.c.b16 %v1635, %v1634
    %v1677 = vpack.c.b16 %v1637, %v1636
    %v1678 = vpack.c.b16 %v1639, %v1638
    %v1679 = vpack.c.b16 %v1641, %v1640
    %v1680 = vpack.c.b16 %v1643, %v1642
    %v1681 = vpack.c.b16 %v1645, %v1644
    %v1682 = vpack.c.b16 %v1647, %v1646
    %v1683 = vpack.c.b16 %v1649, %v1648
    %v1684 = vpack.c.b16 %v1651, %v1650
    %v1685 = vpack.c.b16 %v1653, %v1652
    %1718 = vmatprep.subr.bf16.mxu0 0
    %1719 = vmatpush1.bf16.msra.mxu0 %v1654
    %1720 = vmatprep.subr.bf16.mxu0 0
    %1721 = vmatpush1.bf16.msra.mxu0 %v1655
    %1722 = vmatprep.subr.bf16.mxu0 0
    %1723 = vmatpush1.bf16.msra.mxu0 %v1656
    %1724 = vmatprep.subr.bf16.mxu0 0
    %1725 = vmatpush1.bf16.msra.mxu0 %v1657
    %1726 = vmatprep.subr.bf16.mxu0 0
    %1727 = vmatpush1.bf16.msra.mxu0 %v1658
    %1728 = vmatprep.subr.bf16.mxu0 0
    %1729 = vmatpush1.bf16.msra.mxu0 %v1659
    %1730 = vmatprep.subr.bf16.mxu0 0
    %1731 = vmatpush1.bf16.msra.mxu0 %v1660
    %1732 = vmatprep.subr.bf16.mxu0 0
    %1733 = vmatpush1.bf16.msra.mxu0 %v1661
    %1734 = vmatprep.subr.bf16.mxu0 0
    %1735 = vmatpush1.bf16.msra.mxu0 %v1662
    %1736 = vmatprep.subr.bf16.mxu0 0
    %1737 = vmatpush1.bf16.msra.mxu0 %v1663
    %1738 = vmatprep.subr.bf16.mxu0 0
    %1739 = vmatpush1.bf16.msra.mxu0 %v1664
    %1740 = vmatprep.subr.bf16.mxu0 0
    %1741 = vmatpush1.bf16.msra.mxu0 %v1665
    %1742 = vmatprep.subr.bf16.mxu0 0
    %1743 = vmatpush1.bf16.msra.mxu0 %v1666
    %1744 = vmatprep.subr.bf16.mxu0 0
    %1745 = vmatpush1.bf16.msra.mxu0 %v1667
    %1746 = vmatprep.subr.bf16.mxu0 0
    %1747 = vmatpush1.bf16.msra.mxu0 %v1668
    %1748 = vmatprep.subr.bf16.mxu0 0
    %1749 = vmatpush1.bf16.msra.mxu0 %v1669
    %1750 = vmatprep.mubr.bf16.mxu0 %v1459
    %1751 = vmatmul.mubr.bf16.gmra.mrb[0].mxu0 %v1458
    %v1752 = vpop.f32.mrb[0].mxu0
    %v1753 = vadd.f32 0.0, %v1752
    %v1754 = vpop.f32.mrb[0].mxu0
    %v1755 = vpop.f32.mrb[0].mxu0
    %v1756 = vpop.f32.mrb[0].mxu0
    %1757 = vdwg.mxu0
    %1758 = vmatprep.subr.bf16.mxu0 0
    %1759 = vmatpush1.bf16.msra.mxu0 %v1670
    %1760 = vmatprep.subr.bf16.mxu0 0
    %1761 = vmatpush1.bf16.msra.mxu0 %v1671
    %1762 = vmatprep.subr.bf16.mxu0 0
    %1763 = vmatpush1.bf16.msra.mxu0 %v1672
    %1764 = vmatprep.subr.bf16.mxu0 0
    %1765 = vmatpush1.bf16.msra.mxu0 %v1673
    %1766 = vmatprep.subr.bf16.mxu0 0
    %1767 = vmatpush1.bf16.msra.mxu0 %v1674
    %1768 = vmatprep.subr.bf16.mxu0 0
    %1769 = vmatpush1.bf16.msra.mxu0 %v1675
    %1770 = vmatprep.subr.bf16.mxu0 0
    %1771 = vmatpush1.bf16.msra.mxu0 %v1676
    %1772 = vmatprep.subr.bf16.mxu0 0
    %1773 = vmatpush1.bf16.msra.mxu0 %v1677
    %1774 = vmatprep.subr.bf16.mxu0 0
    %1775 = vmatpush1.bf16.msra.mxu0 %v1678
    %1776 = vmatprep.subr.bf16.mxu0 0
    %1777 = vmatpush1.bf16.msra.mxu0 %v1679
    %1778 = vmatprep.subr.bf16.mxu0 0
    %1779 = vmatpush1.bf16.msra.mxu0 %v1680
    %1780 = vmatprep.subr.bf16.mxu0 0
    %1781 = vmatpush1.bf16.msra.mxu0 %v1681
    %1782 = vmatprep.subr.bf16.mxu0 0
    %1783 = vmatpush1.bf16.msra.mxu0 %v1682
    %1784 = vmatprep.subr.bf16.mxu0 0
    %1785 = vmatpush1.bf16.msra.mxu0 %v1683
    %1786 = vmatprep.subr.bf16.mxu0 0
    %1787 = vmatpush1.bf16.msra.mxu0 %v1684
    %1788 = vmatprep.subr.bf16.mxu0 0
    %1789 = vmatpush1.bf16.msra.mxu0 %v1685
    %1790 = vmatprep.mubr.bf16.mxu0 %v1461
    %1791 = vmatmul.mubr.bf16.gmra.mrb[0].mxu0 %v1460
    %v1792 = vpop.f32.mrb[0].mxu0
    %v1793 = vadd.f32 %v1753, %v1792
    %v1794 = vpop.f32.mrb[0].mxu0
    %v1795 = vpop.f32.mrb[0].mxu0
    %v1796 = vpop.f32.mrb[0].mxu0
    %1797 = vdwg.mxu0
    %vm1798 = vcmask 1041408
    %v1799 = vsel %vm1798, %v1793, 0.0
    %v1800 = vrot.slane %v1799, 4
    %v1801 = vadd.f32 %v1799, %v1800
    %v1802 = vrot.slane %v1801, 2
    %v1803 = vadd.f32 %v1801, %v1802
    %v1804 = vrot.slane %v1803, 1
    %v1805 = vadd.f32 %v1803, %v1804
    %v1806 = vmul.f32 %v1805, 0.5
    %v1807 = vsub.f32 %v1793, %v1806
    %v1808 = vmul.f32 %v1807, %v1807
    %v1809 = vsel %vm1798, %v1808, 0.0
    %v1810 = vrot.slane %v1809, 4
    %v1811 = vadd.f32 %v1809, %v1810
    %v1812 = vrot.slane %v1811, 2
    %v1813 = vadd.f32 %v1811, %v1812
    %v1814 = vrot.slane %v1813, 1
    %v1815 = vadd.f32 %v1813, %v1814
    %v1816 = vmul.f32 %v1815, 0.5
    %v1817 = vld [vmem:[%s19] sm:$0x1]
    %v1818 = vadd.f32 %v1816, 1e-05
    %v1819 = vrsqrt.pop %v1818
    %v1820 = vmul.f32 %v1817, %v1819
    %v1822 = vlaneseq
    %v1823 = vshrl.u32 %v1822, 7
    %v1824 = vsub.s32 0, %v1823
    %v1825 = vrot.slane %v1820, %v1824
    %v1827 = vmul.f32 %v1807, %v1825
    %v1828 = vld [vmem:[%s20] sm:$0x1]
    %v1830 = vlaneseq
    %v1831 = vshrl.u32 %v1830, 7
    %v1832 = vsub.s32 0, %v1831
    %v1833 = vrot.slane %v1828, %v1832
    %v1835 = vadd.f32 %v1827, %v1833
    %1836 = vst [vmem:[#allocation13] sm:$0x3] %v1835
    // Predicated region
    $region102: #{tpu_custom_call.1} parent=1 // pred_check
      _
    $region103: #{tpu_custom_call.1} parent=1 // pred_check_branch
      %1838 = sbr.rel (0) target = $region105
    $region104: #{tpu_custom_call.1} parent=1 // pred_region
      %s1840 = ssub.s32 32, 32
      %1841 = vsyncadd [#allocation7], %s1840
      %s1843 = sshll.u32 [#allocation13], 4
      %s1844 = int_to_ptr.vmem [resolvable:$true] %s1843
      %1846 = dma.vmem_to_hbm [thread:$0]  %s1844, 32, %s21, [#allocation7]
    $region105: #{tpu_custom_call.1} parent=1 // pred_fallthru
      _
    // Predicated region
    $region106: #{tpu_custom_call.1} parent=1 // pred_check
      _
    $region107: #{tpu_custom_call.1} parent=1 // pred_check_branch
      %1848 = sbr.rel (0) target = $region109
    $region108: #{tpu_custom_call.1} parent=1 // pred_region
      %1849 = dma.done [#allocation7], 32
    $region109: #{tpu_custom_call.1} parent=1 // pred_fallthru
      _
    %1850 = vsyncpa [#allocation6], 1
    %1851 = vsyncpa [#allocation9], 1
    %1852 = vsyncpa [#allocation12], 1
    %1853 = vsyncpa [#allocation7], 1

</llo_original>
